<compile_context>
chip_gen: v7x
topology: tpu7x:2x2x1
jax: 0.10.0
libtpu: 0.0.40
codegen_flags: <defaults>
</compile_context>

<pallas_src>
import jax
import jax.numpy as jnp
import numpy as np
from jax.experimental import pallas as pl
from jax.experimental.pallas import tpu as pltpu

BN_EPS = 1e-5


# ---------------------------------------------------------------------------
# Stage 1: depthwise taps (alpha-folded) + pointwise conv + BN partial sums
# ---------------------------------------------------------------------------
def _akfb_stage1_kernel(xs_ref, wle_ref, wde_ref, fwt_ref, y_ref, s1_ref, s2_ref):
    # xs_ref : (1, Th+4, W+4, C)  padded input slab (2-pixel halo on every side)
    # wle_ref: (1, 9, C)          alpha        * dw_local  taps for this sample
    # wde_ref: (1, 9, C)          (1 - alpha)  * dw_dilated taps
    # fwt_ref: (C, C)             pointwise conv weight, (Cin, Cout)
    # y_ref  : (1, Th, W, C)      pre-BN output tile
    # s1_ref, s2_ref : (1, 1, C)  per-tile sum(y), sum(y*y)
    _, Th, W, C = y_ref.shape

    xs = xs_ref[...][0]                          # (Th+4, W+4, C)
    wle = wle_ref[...][0][:, None, None, :]      # (9, 1, 1, C) broadcast hoisted
    wde = wde_ref[...][0][:, None, None, :]

    fused = jnp.zeros((Th, W, C), jnp.float32)
    # Single alpha-weighted accumulator: 9 dilation-1 taps + 9 dilation-2 taps.
    for kh in range(3):
        for kw in range(3):
            k = kh * 3 + kw
            t1 = xs[kh + 1:kh + 1 + Th, kw + 1:kw + 1 + W, :]   # pad=1, dil=1
            t2 = xs[2 * kh:2 * kh + Th, 2 * kw:2 * kw + W, :]   # pad=2, dil=2
            fused = fused + wle[k] * t1 + wde[k] * t2

    # Pointwise (1x1) conv on the MXU.
    y = jnp.dot(fused.reshape(Th * W, C), fwt_ref[...],
                preferred_element_type=jnp.float32)             # (Th*W, C)

    y_ref[...] = y.reshape(1, Th, W, C)
    s1_ref[...] = jnp.sum(y, axis=0).reshape(1, 1, C)
    s2_ref[...] = jnp.sum(y * y, axis=0).reshape(1, 1, C)


# ---------------------------------------------------------------------------
# Stage 2: BatchNorm (global batch stats) + ReLU, applied in place over y
# ---------------------------------------------------------------------------
def _akfb_stage2_kernel(y_ref, scale_ref, shift_ref, o_ref):
    sc = scale_ref[...].reshape(1, 1, 1, -1)
    sh = shift_ref[...].reshape(1, 1, 1, -1)
    o_ref[...] = jnp.maximum(y_ref[...] * sc + sh, 0.0)


# ---------------------------------------------------------------------------
# Wrapper (NCHW in / NCHW out, matching the PyTorch module)
# ---------------------------------------------------------------------------
def _pick_tile_h(H, W, C, budget_bytes=2 << 20):
    best = 1
    for th in range(1, H + 1):
        if H % th == 0 and (th + 4) * (W + 4) * C * 4 <= budget_bytes:
            best = th
    return best


def akfb_forward(x_nchw, params, tile_h=None):
    N, C, H, W = x_nchw.shape
    Th = _pick_tile_h(H, W, C) if tile_h is None else int(tile_h)
    assert H % Th == 0, "tile_h must divide H"
    nH = H // Th
    Wp = W + 4
    x32 = x_nchw.astype(jnp.float32)

    # --- gate: global avg pool + 1x1 conv + sigmoid (tiny (N,C) math), folded
    #     into per-sample effective depthwise tap weights.
    gw = params["gate_w"].reshape(C, C)                              # (Cout, Cin)
    desc = jnp.mean(x32, axis=(2, 3))                                # (N, C)
    alpha = jax.nn.sigmoid(desc @ gw.T + params["gate_b"].reshape(1, C))

    wl = params["dw_local"].reshape(C, 9).T                          # (9, C), k = kh*3+kw
    wd = params["dw_dilated"].reshape(C, 9).T
    wle = (alpha[:, None, :] * wl[None]).astype(jnp.float32)         # (N, 9, C)
    wde = ((1.0 - alpha)[:, None, :] * wd[None]).astype(jnp.float32)
    fwt = params["fuse_w"].reshape(C, C).T.astype(jnp.float32)       # (Cin, Cout)

    # --- NHWC + 2-pixel halo; overlapping row slabs so every grid step is
    #     self-contained (halo handled by the slab, BlockSpec stays Blocked).
    x_nhwc = jnp.transpose(x32, (0, 2, 3, 1))                        # (N, H, W, C)
    xp = jnp.pad(x_nhwc, ((0, 0), (2, 2), (2, 2), (0, 0)))
    xslab = jnp.stack([xp[:, r * Th:r * Th + Th + 4] for r in range(nH)], axis=1)
    xslab = xslab.reshape(N * nH, Th + 4, Wp, C)

    grid = (N, nH)
    parallel2 = pltpu.CompilerParams(
        dimension_semantics=("parallel", "parallel"))

    flops = int(N * H * W * C * (2 * C + 4 * 9))
    bytes_accessed = int(4 * (xslab.size + 2 * N * H * W * C
                              + 2 * N * nH * C + 2 * N * 9 * C + C * C))

    # ---- stage 1 -----------------------------------------------------------
    y, s1, s2 = pl.pallas_call(
        _akfb_stage1_kernel,
        grid=grid,
        in_specs=[
            pl.BlockSpec((1, Th + 4, Wp, C),
                         lambda n, r, nH=nH: (n * nH + r, 0, 0, 0)),
            pl.BlockSpec((1, 9, C), lambda n, r: (n, 0, 0)),
            pl.BlockSpec((1, 9, C), lambda n, r: (n, 0, 0)),
            pl.BlockSpec((C, C), lambda n, r: (0, 0)),
        ],
        out_specs=[
            pl.BlockSpec((1, Th, W, C), lambda n, r: (n, r, 0, 0)),
            pl.BlockSpec((1, 1, C), lambda n, r, nH=nH: (n * nH + r, 0, 0)),
            pl.BlockSpec((1, 1, C), lambda n, r, nH=nH: (n * nH + r, 0, 0)),
        ],
        out_shape=(
            jax.ShapeDtypeStruct((N, H, W, C), jnp.float32),
            jax.ShapeDtypeStruct((N * nH, 1, C), jnp.float32),
            jax.ShapeDtypeStruct((N * nH, 1, C), jnp.float32),
        ),
        compiler_params=parallel2,
        cost_estimate=pl.CostEstimate(flops=flops, transcendentals=0,
                                      bytes_accessed=bytes_accessed),
    )(xslab, wle, wde, fwt)

    # ---- global BN statistics (training mode, biased variance) --------------
    M = N * H * W
    mu = jnp.sum(s1, axis=(0, 1)) / M                               # (C,)
    var = jnp.maximum(jnp.sum(s2, axis=(0, 1)) / M - mu * mu, 0.0)  # one-pass E[y^2]-E[y]^2
    scale_v = params["bn_gamma"] * jax.lax.rsqrt(var + BN_EPS)
    shift_v = params["bn_beta"] - mu * scale_v
    scale = scale_v.reshape(1, C).astype(jnp.float32)
    shift = shift_v.reshape(1, C).astype(jnp.float32)

    # ---- stage 2: BN + ReLU, written in place over y ------------------------
    out_nhwc = pl.pallas_call(
        _akfb_stage2_kernel,
        grid=grid,
        in_specs=[
            pl.BlockSpec((1, Th, W, C), lambda n, r: (n, r, 0, 0)),
            pl.BlockSpec((1, C), lambda n, r: (0, 0)),
            pl.BlockSpec((1, C), lambda n, r: (0, 0)),
        ],
        out_specs=pl.BlockSpec((1, Th, W, C), lambda n, r: (n, r, 0, 0)),
        out_shape=jax.ShapeDtypeStruct((N, H, W, C), jnp.float32),
        compiler_params=parallel2,
        input_output_aliases={0: 0},
    )(y, scale, shift)

    return jnp.transpose(out_nhwc, (0, 3, 1, 2))                    # back to NCHW


# ---------------------------------------------------------------------------
# Pure-JAX reference (mirrors the PyTorch forward in training mode)
# ---------------------------------------------------------------------------
def akfb_reference(x_nchw, p):
    N, C, H, W = x_nchw.shape
    local = jax.lax.conv_general_dilated(
        x_nchw, p["dw_local"], window_strides=(1, 1), padding=((1, 1), (1, 1)),
        dimension_numbers=("NCHW", "OIHW", "NCHW"), feature_group_count=C)
    dilated = jax.lax.conv_general_dilated(
        x_nchw, p["dw_dilated"], window_strides=(1, 1), padding=((2, 2), (2, 2)),
        rhs_dilation=(2, 2),
        dimension_numbers=("NCHW", "OIHW", "NCHW"), feature_group_count=C)
    desc = jnp.mean(x_nchw, axis=(2, 3))
    alpha = jax.nn.sigmoid(desc @ p["gate_w"].reshape(C, C).T + p["gate_b"])
    alpha = alpha[:, :, None, None]
    fused = alpha * local + (1.0 - alpha) * dilated
    y = jnp.einsum("oi,nihw->nohw", p["fuse_w"].reshape(C, C), fused)
    mu = jnp.mean(y, axis=(0, 2, 3), keepdims=True)
    var = jnp.mean((y - mu) ** 2, axis=(0, 2, 3), keepdims=True)
    yn = (y - mu) / jnp.sqrt(var + BN_EPS)
    out = yn * p["bn_gamma"][None, :, None, None] + p["bn_beta"][None, :, None, None]
    return jnp.maximum(out, 0.0)


if __name__ == "__main__":
    N, C, H, W = 2, 4, 16, 16
    key = jax.random.PRNGKey(0)
    ks = jax.random.split(key, 6)
    params = {
        "dw_local":   jax.random.normal(ks[0], (C, 1, 3, 3), jnp.float32) * 0.3,
        "dw_dilated": jax.random.normal(ks[1], (C, 1, 3, 3), jnp.float32) * 0.3,
        "gate_w":     jax.random.normal(ks[2], (C, C, 1, 1), jnp.float32) * 0.3,
        "gate_b":     jax.random.normal(ks[3], (C,), jnp.float32) * 0.1,
        "fuse_w":     jax.random.normal(ks[4], (C, C, 1, 1), jnp.float32) * 0.3,
        "bn_gamma":   jnp.ones((C,), jnp.float32),
        "bn_beta":    jnp.zeros((C,), jnp.float32),
    }
    x = jax.random.normal(ks[5], (N, C, H, W), jnp.float32)

    fwd = jax.jit(akfb_forward, static_argnames=("tile_h",))
    out = jax.block_until_ready(fwd(x, params, tile_h=8))   # grid = (2 batches, 2 row tiles)
    ref = jax.block_until_ready(akfb_reference(x, params))

    assert out.shape == (N, C, H, W)
    np.testing.assert_allclose(np.asarray(out), np.asarray(ref), atol=1e-4, rtol=1e-4)
    print("KERNEL_OK")
</pallas_src>

<mosaic_0001>
module attributes {stable_mosaic.version = 11 : i64} {
  func.func @_akfb_stage1_kernel(%arg0: i32, %arg1: i32, %arg2: memref<1x12x20x4xf32, #tpu.memory_space<vmem>>, %arg3: memref<1x9x4xf32, #tpu.memory_space<vmem>>, %arg4: memref<1x9x4xf32, #tpu.memory_space<vmem>>, %arg5: memref<4x4xf32, #tpu.memory_space<vmem>>, %arg6: memref<1x8x16x4xf32, #tpu.memory_space<vmem>>, %arg7: memref<1x1x4xf32, #tpu.memory_space<vmem>>, %arg8: memref<1x1x4xf32, #tpu.memory_space<vmem>>) attributes {dimension_semantics = [#tpu.dimension_semantics<parallel>, #tpu.dimension_semantics<parallel>], iteration_bounds = array<i64: 2, 2>, scalar_prefetch = 0 : i64, scratch_operands = 0 : i64, tpu.core_type = #tpu.core_type<tc>, window_params = [{transform_indices = @transform_0, window_bounds = array<i64: 1, 12, 20, 4>}, {transform_indices = @transform_1, window_bounds = array<i64: 1, 9, 4>}, {transform_indices = @transform_2, window_bounds = array<i64: 1, 9, 4>}, {pipeline_mode = #tpu.pipeline_mode<synchronous>, transform_indices = @transform_3, window_bounds = array<i64: 4, 4>}, {transform_indices = @transform_4, window_bounds = array<i64: 1, 8, 16, 4>}, {transform_indices = @transform_5, window_bounds = array<i64: 1, 1, 4>}, {transform_indices = @transform_6, window_bounds = array<i64: 1, 1, 4>}]} {
    %c0 = arith.constant 0 : index
    %c0_0 = arith.constant 0 : index
    %c0_1 = arith.constant 0 : index
    %c0_2 = arith.constant 0 : index
    %0 = vector.load %arg2[%c0, %c0_0, %c0_1, %c0_2] : memref<1x12x20x4xf32, #tpu.memory_space<vmem>>, vector<1x12x20x4xf32>
    %1 = vector.shape_cast %0 : vector<1x12x20x4xf32> to vector<12x20x4xf32>
    %c0_3 = arith.constant 0 : index
    %c0_4 = arith.constant 0 : index
    %c0_5 = arith.constant 0 : index
    %2 = vector.load %arg3[%c0_3, %c0_4, %c0_5] : memref<1x9x4xf32, #tpu.memory_space<vmem>>, vector<1x9x4xf32>
    %3 = vector.shape_cast %2 : vector<1x9x4xf32> to vector<9x4xf32>
    %4 = vector.shape_cast %3 : vector<9x4xf32> to vector<9x1x1x4xf32>
    %c0_6 = arith.constant 0 : index
    %c0_7 = arith.constant 0 : index
    %c0_8 = arith.constant 0 : index
    %5 = vector.load %arg4[%c0_6, %c0_7, %c0_8] : memref<1x9x4xf32, #tpu.memory_space<vmem>>, vector<1x9x4xf32>
    %6 = vector.shape_cast %5 : vector<1x9x4xf32> to vector<9x4xf32>
    %7 = vector.shape_cast %6 : vector<9x4xf32> to vector<9x1x1x4xf32>
    %cst = arith.constant 0.000000e+00 : f32
    %8 = vector.broadcast %cst : f32 to vector<8x16x4xf32>
    %9 = vector.extract_strided_slice %1 {offsets = [1, 1, 0], sizes = [8, 16, 4], strides = [1, 1, 1]} : vector<12x20x4xf32> to vector<8x16x4xf32>
    %10 = vector.extract_strided_slice %1 {offsets = [0, 0, 0], sizes = [8, 16, 4], strides = [1, 1, 1]} : vector<12x20x4xf32> to vector<8x16x4xf32>
    %11 = vector.extract_strided_slice %4 {offsets = [0, 0, 0, 0], sizes = [1, 1, 1, 4], strides = [1, 1, 1, 1]} : vector<9x1x1x4xf32> to vector<1x1x1x4xf32>
    %12 = vector.shape_cast %11 : vector<1x1x1x4xf32> to vector<1x1x4xf32>
    %13 = vector.broadcast %12 : vector<1x1x4xf32> to vector<8x16x4xf32>
    %14 = arith.mulf %13, %9 : vector<8x16x4xf32>
    %15 = arith.addf %8, %14 : vector<8x16x4xf32>
    %16 = vector.extract_strided_slice %7 {offsets = [0, 0, 0, 0], sizes = [1, 1, 1, 4], strides = [1, 1, 1, 1]} : vector<9x1x1x4xf32> to vector<1x1x1x4xf32>
    %17 = vector.shape_cast %16 : vector<1x1x1x4xf32> to vector<1x1x4xf32>
    %18 = vector.broadcast %17 : vector<1x1x4xf32> to vector<8x16x4xf32>
    %19 = arith.mulf %18, %10 : vector<8x16x4xf32>
    %20 = arith.addf %15, %19 : vector<8x16x4xf32>
    %21 = vector.extract_strided_slice %1 {offsets = [1, 2, 0], sizes = [8, 16, 4], strides = [1, 1, 1]} : vector<12x20x4xf32> to vector<8x16x4xf32>
    %22 = vector.extract_strided_slice %1 {offsets = [0, 2, 0], sizes = [8, 16, 4], strides = [1, 1, 1]} : vector<12x20x4xf32> to vector<8x16x4xf32>
    %23 = vector.extract_strided_slice %4 {offsets = [1, 0, 0, 0], sizes = [1, 1, 1, 4], strides = [1, 1, 1, 1]} : vector<9x1x1x4xf32> to vector<1x1x1x4xf32>
    %24 = vector.shape_cast %23 : vector<1x1x1x4xf32> to vector<1x1x4xf32>
    %25 = vector.broadcast %24 : vector<1x1x4xf32> to vector<8x16x4xf32>
    %26 = arith.mulf %25, %21 : vector<8x16x4xf32>
    %27 = arith.addf %20, %26 : vector<8x16x4xf32>
    %28 = vector.extract_strided_slice %7 {offsets = [1, 0, 0, 0], sizes = [1, 1, 1, 4], strides = [1, 1, 1, 1]} : vector<9x1x1x4xf32> to vector<1x1x1x4xf32>
    %29 = vector.shape_cast %28 : vector<1x1x1x4xf32> to vector<1x1x4xf32>
    %30 = vector.broadcast %29 : vector<1x1x4xf32> to vector<8x16x4xf32>
    %31 = arith.mulf %30, %22 : vector<8x16x4xf32>
    %32 = arith.addf %27, %31 : vector<8x16x4xf32>
    %33 = vector.extract_strided_slice %1 {offsets = [1, 3, 0], sizes = [8, 16, 4], strides = [1, 1, 1]} : vector<12x20x4xf32> to vector<8x16x4xf32>
    %34 = vector.extract_strided_slice %1 {offsets = [0, 4, 0], sizes = [8, 16, 4], strides = [1, 1, 1]} : vector<12x20x4xf32> to vector<8x16x4xf32>
    %35 = vector.extract_strided_slice %4 {offsets = [2, 0, 0, 0], sizes = [1, 1, 1, 4], strides = [1, 1, 1, 1]} : vector<9x1x1x4xf32> to vector<1x1x1x4xf32>
    %36 = vector.shape_cast %35 : vector<1x1x1x4xf32> to vector<1x1x4xf32>
    %37 = vector.broadcast %36 : vector<1x1x4xf32> to vector<8x16x4xf32>
    %38 = arith.mulf %37, %33 : vector<8x16x4xf32>
    %39 = arith.addf %32, %38 : vector<8x16x4xf32>
    %40 = vector.extract_strided_slice %7 {offsets = [2, 0, 0, 0], sizes = [1, 1, 1, 4], strides = [1, 1, 1, 1]} : vector<9x1x1x4xf32> to vector<1x1x1x4xf32>
    %41 = vector.shape_cast %40 : vector<1x1x1x4xf32> to vector<1x1x4xf32>
    %42 = vector.broadcast %41 : vector<1x1x4xf32> to vector<8x16x4xf32>
    %43 = arith.mulf %42, %34 : vector<8x16x4xf32>
    %44 = arith.addf %39, %43 : vector<8x16x4xf32>
    %45 = vector.extract_strided_slice %1 {offsets = [2, 1, 0], sizes = [8, 16, 4], strides = [1, 1, 1]} : vector<12x20x4xf32> to vector<8x16x4xf32>
    %46 = vector.extract_strided_slice %1 {offsets = [2, 0, 0], sizes = [8, 16, 4], strides = [1, 1, 1]} : vector<12x20x4xf32> to vector<8x16x4xf32>
    %47 = vector.extract_strided_slice %4 {offsets = [3, 0, 0, 0], sizes = [1, 1, 1, 4], strides = [1, 1, 1, 1]} : vector<9x1x1x4xf32> to vector<1x1x1x4xf32>
    %48 = vector.shape_cast %47 : vector<1x1x1x4xf32> to vector<1x1x4xf32>
    %49 = vector.broadcast %48 : vector<1x1x4xf32> to vector<8x16x4xf32>
    %50 = arith.mulf %49, %45 : vector<8x16x4xf32>
    %51 = arith.addf %44, %50 : vector<8x16x4xf32>
    %52 = vector.extract_strided_slice %7 {offsets = [3, 0, 0, 0], sizes = [1, 1, 1, 4], strides = [1, 1, 1, 1]} : vector<9x1x1x4xf32> to vector<1x1x1x4xf32>
    %53 = vector.shape_cast %52 : vector<1x1x1x4xf32> to vector<1x1x4xf32>
    %54 = vector.broadcast %53 : vector<1x1x4xf32> to vector<8x16x4xf32>
    %55 = arith.mulf %54, %46 : vector<8x16x4xf32>
    %56 = arith.addf %51, %55 : vector<8x16x4xf32>
    %57 = vector.extract_strided_slice %1 {offsets = [2, 2, 0], sizes = [8, 16, 4], strides = [1, 1, 1]} : vector<12x20x4xf32> to vector<8x16x4xf32>
    %58 = vector.extract_strided_slice %1 {offsets = [2, 2, 0], sizes = [8, 16, 4], strides = [1, 1, 1]} : vector<12x20x4xf32> to vector<8x16x4xf32>
    %59 = vector.extract_strided_slice %4 {offsets = [4, 0, 0, 0], sizes = [1, 1, 1, 4], strides = [1, 1, 1, 1]} : vector<9x1x1x4xf32> to vector<1x1x1x4xf32>
    %60 = vector.shape_cast %59 : vector<1x1x1x4xf32> to vector<1x1x4xf32>
    %61 = vector.broadcast %60 : vector<1x1x4xf32> to vector<8x16x4xf32>
    %62 = arith.mulf %61, %57 : vector<8x16x4xf32>
    %63 = arith.addf %56, %62 : vector<8x16x4xf32>
    %64 = vector.extract_strided_slice %7 {offsets = [4, 0, 0, 0], sizes = [1, 1, 1, 4], strides = [1, 1, 1, 1]} : vector<9x1x1x4xf32> to vector<1x1x1x4xf32>
    %65 = vector.shape_cast %64 : vector<1x1x1x4xf32> to vector<1x1x4xf32>
    %66 = vector.broadcast %65 : vector<1x1x4xf32> to vector<8x16x4xf32>
    %67 = arith.mulf %66, %58 : vector<8x16x4xf32>
    %68 = arith.addf %63, %67 : vector<8x16x4xf32>
    %69 = vector.extract_strided_slice %1 {offsets = [2, 3, 0], sizes = [8, 16, 4], strides = [1, 1, 1]} : vector<12x20x4xf32> to vector<8x16x4xf32>
    %70 = vector.extract_strided_slice %1 {offsets = [2, 4, 0], sizes = [8, 16, 4], strides = [1, 1, 1]} : vector<12x20x4xf32> to vector<8x16x4xf32>
    %71 = vector.extract_strided_slice %4 {offsets = [5, 0, 0, 0], sizes = [1, 1, 1, 4], strides = [1, 1, 1, 1]} : vector<9x1x1x4xf32> to vector<1x1x1x4xf32>
    %72 = vector.shape_cast %71 : vector<1x1x1x4xf32> to vector<1x1x4xf32>
    %73 = vector.broadcast %72 : vector<1x1x4xf32> to vector<8x16x4xf32>
    %74 = arith.mulf %73, %69 : vector<8x16x4xf32>
    %75 = arith.addf %68, %74 : vector<8x16x4xf32>
    %76 = vector.extract_strided_slice %7 {offsets = [5, 0, 0, 0], sizes = [1, 1, 1, 4], strides = [1, 1, 1, 1]} : vector<9x1x1x4xf32> to vector<1x1x1x4xf32>
    %77 = vector.shape_cast %76 : vector<1x1x1x4xf32> to vector<1x1x4xf32>
    %78 = vector.broadcast %77 : vector<1x1x4xf32> to vector<8x16x4xf32>
    %79 = arith.mulf %78, %70 : vector<8x16x4xf32>
    %80 = arith.addf %75, %79 : vector<8x16x4xf32>
    %81 = vector.extract_strided_slice %1 {offsets = [3, 1, 0], sizes = [8, 16, 4], strides = [1, 1, 1]} : vector<12x20x4xf32> to vector<8x16x4xf32>
    %82 = vector.extract_strided_slice %1 {offsets = [4, 0, 0], sizes = [8, 16, 4], strides = [1, 1, 1]} : vector<12x20x4xf32> to vector<8x16x4xf32>
    %83 = vector.extract_strided_slice %4 {offsets = [6, 0, 0, 0], sizes = [1, 1, 1, 4], strides = [1, 1, 1, 1]} : vector<9x1x1x4xf32> to vector<1x1x1x4xf32>
    %84 = vector.shape_cast %83 : vector<1x1x1x4xf32> to vector<1x1x4xf32>
    %85 = vector.broadcast %84 : vector<1x1x4xf32> to vector<8x16x4xf32>
    %86 = arith.mulf %85, %81 : vector<8x16x4xf32>
    %87 = arith.addf %80, %86 : vector<8x16x4xf32>
    %88 = vector.extract_strided_slice %7 {offsets = [6, 0, 0, 0], sizes = [1, 1, 1, 4], strides = [1, 1, 1, 1]} : vector<9x1x1x4xf32> to vector<1x1x1x4xf32>
    %89 = vector.shape_cast %88 : vector<1x1x1x4xf32> to vector<1x1x4xf32>
    %90 = vector.broadcast %89 : vector<1x1x4xf32> to vector<8x16x4xf32>
    %91 = arith.mulf %90, %82 : vector<8x16x4xf32>
    %92 = arith.addf %87, %91 : vector<8x16x4xf32>
    %93 = vector.extract_strided_slice %1 {offsets = [3, 2, 0], sizes = [8, 16, 4], strides = [1, 1, 1]} : vector<12x20x4xf32> to vector<8x16x4xf32>
    %94 = vector.extract_strided_slice %1 {offsets = [4, 2, 0], sizes = [8, 16, 4], strides = [1, 1, 1]} : vector<12x20x4xf32> to vector<8x16x4xf32>
    %95 = vector.extract_strided_slice %4 {offsets = [7, 0, 0, 0], sizes = [1, 1, 1, 4], strides = [1, 1, 1, 1]} : vector<9x1x1x4xf32> to vector<1x1x1x4xf32>
    %96 = vector.shape_cast %95 : vector<1x1x1x4xf32> to vector<1x1x4xf32>
    %97 = vector.broadcast %96 : vector<1x1x4xf32> to vector<8x16x4xf32>
    %98 = arith.mulf %97, %93 : vector<8x16x4xf32>
    %99 = arith.addf %92, %98 : vector<8x16x4xf32>
    %100 = vector.extract_strided_slice %7 {offsets = [7, 0, 0, 0], sizes = [1, 1, 1, 4], strides = [1, 1, 1, 1]} : vector<9x1x1x4xf32> to vector<1x1x1x4xf32>
    %101 = vector.shape_cast %100 : vector<1x1x1x4xf32> to vector<1x1x4xf32>
    %102 = vector.broadcast %101 : vector<1x1x4xf32> to vector<8x16x4xf32>
    %103 = arith.mulf %102, %94 : vector<8x16x4xf32>
    %104 = arith.addf %99, %103 : vector<8x16x4xf32>
    %105 = vector.extract_strided_slice %1 {offsets = [3, 3, 0], sizes = [8, 16, 4], strides = [1, 1, 1]} : vector<12x20x4xf32> to vector<8x16x4xf32>
    %106 = vector.extract_strided_slice %1 {offsets = [4, 4, 0], sizes = [8, 16, 4], strides = [1, 1, 1]} : vector<12x20x4xf32> to vector<8x16x4xf32>
    %107 = vector.extract_strided_slice %4 {offsets = [8, 0, 0, 0], sizes = [1, 1, 1, 4], strides = [1, 1, 1, 1]} : vector<9x1x1x4xf32> to vector<1x1x1x4xf32>
    %108 = vector.shape_cast %107 : vector<1x1x1x4xf32> to vector<1x1x4xf32>
    %109 = vector.broadcast %108 : vector<1x1x4xf32> to vector<8x16x4xf32>
    %110 = arith.mulf %109, %105 : vector<8x16x4xf32>
    %111 = arith.addf %104, %110 : vector<8x16x4xf32>
    %112 = vector.extract_strided_slice %7 {offsets = [8, 0, 0, 0], sizes = [1, 1, 1, 4], strides = [1, 1, 1, 1]} : vector<9x1x1x4xf32> to vector<1x1x1x4xf32>
    %113 = vector.shape_cast %112 : vector<1x1x1x4xf32> to vector<1x1x4xf32>
    %114 = vector.broadcast %113 : vector<1x1x4xf32> to vector<8x16x4xf32>
    %115 = arith.mulf %114, %106 : vector<8x16x4xf32>
    %116 = arith.addf %111, %115 : vector<8x16x4xf32>
    %117 = vector.shape_cast %116 : vector<8x16x4xf32> to vector<128x4xf32>
    %c0_9 = arith.constant 0 : index
    %c0_10 = arith.constant 0 : index
    %118 = vector.load %arg5[%c0_9, %c0_10] : memref<4x4xf32, #tpu.memory_space<vmem>>, vector<4x4xf32>
    %cst_11 = arith.constant dense<0.000000e+00> : vector<128x4xf32>
    %119 = tpu.matmul %117, %118, %cst_11 {dimension_numbers = #tpu.dot_dimension_numbers<[1], [0], [0], [1], [0, 0, 1, 1], [], []>} : vector<128x4xf32>, vector<4x4xf32>, vector<128x4xf32> -> vector<128x4xf32>
    %120 = vector.shape_cast %119 : vector<128x4xf32> to vector<1x8x16x4xf32>
    %c0_12 = arith.constant 0 : index
    %c0_13 = arith.constant 0 : index
    %c0_14 = arith.constant 0 : index
    %c0_15 = arith.constant 0 : index
    %121 = vector.load %arg6[%c0_12, %c0_13, %c0_14, %c0_15] : memref<1x8x16x4xf32, #tpu.memory_space<vmem>>, vector<1x8x16x4xf32>
    tpu.vector_store %arg6[%c0_12, %c0_13, %c0_14, %c0_15], %120 {strides = array<i32>} : memref<1x8x16x4xf32, #tpu.memory_space<vmem>>, vector<1x8x16x4xf32>,
    %cst_16 = arith.constant dense<0.000000e+00> : vector<4xf32>
    %122 = vector.multi_reduction <add>, %119, %cst_16 [0] : vector<128x4xf32> to vector<4xf32>
    %123 = vector.shape_cast %122 : vector<4xf32> to vector<1x1x4xf32>
    %c0_17 = arith.constant 0 : index
    %c0_18 = arith.constant 0 : index
    %c0_19 = arith.constant 0 : index
    %124 = vector.load %arg7[%c0_17, %c0_18, %c0_19] : memref<1x1x4xf32, #tpu.memory_space<vmem>>, vector<1x1x4xf32>
    tpu.vector_store %arg7[%c0_17, %c0_18, %c0_19], %123 {strides = array<i32>} : memref<1x1x4xf32, #tpu.memory_space<vmem>>, vector<1x1x4xf32>,
    %125 = arith.mulf %119, %119 : vector<128x4xf32>
    %cst_20 = arith.constant dense<0.000000e+00> : vector<4xf32>
    %126 = vector.multi_reduction <add>, %125, %cst_20 [0] : vector<128x4xf32> to vector<4xf32>
    %127 = vector.shape_cast %126 : vector<4xf32> to vector<1x1x4xf32>
    %c0_21 = arith.constant 0 : index
    %c0_22 = arith.constant 0 : index
    %c0_23 = arith.constant 0 : index
    %128 = vector.load %arg8[%c0_21, %c0_22, %c0_23] : memref<1x1x4xf32, #tpu.memory_space<vmem>>, vector<1x1x4xf32>
    tpu.vector_store %arg8[%c0_21, %c0_22, %c0_23], %127 {strides = array<i32>} : memref<1x1x4xf32, #tpu.memory_space<vmem>>, vector<1x1x4xf32>,
    return
  }
  func.func @transform_0(%arg0: i32, %arg1: i32) -> (i32, i32, i32, i32) {
    %c2_i32 = arith.constant 2 : i32
    %0 = arith.muli %arg0, %c2_i32 : i32
    %1 = arith.addi %0, %arg1 : i32
    %c0_i32 = arith.constant 0 : i32
    %c0_i32_0 = arith.constant 0 : i32
    %c0_i32_1 = arith.constant 0 : i32
    %c0_i32_2 = arith.constant 0 : i32
    return %1, %c0_i32, %c0_i32_0, %c0_i32_1 : i32, i32, i32, i32
  }
  func.func @transform_1(%arg0: i32, %arg1: i32) -> (i32, i32, i32) {
    %c0_i32 = arith.constant 0 : i32
    %c0_i32_0 = arith.constant 0 : i32
    %c0_i32_1 = arith.constant 0 : i32
    return %arg0, %c0_i32, %c0_i32_0 : i32, i32, i32
  }
  func.func @transform_2(%arg0: i32, %arg1: i32) -> (i32, i32, i32) {
    %c0_i32 = arith.constant 0 : i32
    %c0_i32_0 = arith.constant 0 : i32
    %c0_i32_1 = arith.constant 0 : i32
    return %arg0, %c0_i32, %c0_i32_0 : i32, i32, i32
  }
  func.func @transform_3(%arg0: i32, %arg1: i32) -> (i32, i32) {
    %c0_i32 = arith.constant 0 : i32
    %c0_i32_0 = arith.constant 0 : i32
    %c0_i32_1 = arith.constant 0 : i32
    return %c0_i32, %c0_i32_0 : i32, i32
  }
  func.func @transform_4(%arg0: i32, %arg1: i32) -> (i32, i32, i32, i32) {
    %c0_i32 = arith.constant 0 : i32
    %c0_i32_0 = arith.constant 0 : i32
    %c0_i32_1 = arith.constant 0 : i32
    return %arg0, %arg1, %c0_i32, %c0_i32_0 : i32, i32, i32, i32
  }
  func.func @transform_5(%arg0: i32, %arg1: i32) -> (i32, i32, i32) {
    %c2_i32 = arith.constant 2 : i32
    %0 = arith.muli %arg0, %c2_i32 : i32
    %1 = arith.addi %0, %arg1 : i32
    %c0_i32 = arith.constant 0 : i32
    %c0_i32_0 = arith.constant 0 : i32
    %c0_i32_1 = arith.constant 0 : i32
    return %1, %c0_i32, %c0_i32_0 : i32, i32, i32
  }
  func.func @transform_6(%arg0: i32, %arg1: i32) -> (i32, i32, i32) {
    %c2_i32 = arith.constant 2 : i32
    %0 = arith.muli %arg0, %c2_i32 : i32
    %1 = arith.addi %0, %arg1 : i32
    %c0_i32 = arith.constant 0 : i32
    %c0_i32_0 = arith.constant 0 : i32
    %c0_i32_1 = arith.constant 0 : i32
    return %1, %c0_i32, %c0_i32_0 : i32, i32, i32
  }
}

module attributes {stable_mosaic.version = 11 : i64} {
  func.func @_akfb_stage2_kernel(%arg0: i32, %arg1: i32, %arg2: memref<1x8x16x4xf32, #tpu.memory_space<vmem>>, %arg3: memref<1x4xf32, #tpu.memory_space<vmem>>, %arg4: memref<1x4xf32, #tpu.memory_space<vmem>>, %arg5: memref<1x8x16x4xf32, #tpu.memory_space<vmem>>) attributes {dimension_semantics = [#tpu.dimension_semantics<parallel>, #tpu.dimension_semantics<parallel>], iteration_bounds = array<i64: 2, 2>, scalar_prefetch = 0 : i64, scratch_operands = 0 : i64, tpu.core_type = #tpu.core_type<tc>, window_params = [{transform_indices = @transform_0, window_bounds = array<i64: 1, 8, 16, 4>}, {pipeline_mode = #tpu.pipeline_mode<synchronous>, transform_indices = @transform_1, window_bounds = array<i64: 1, 4>}, {pipeline_mode = #tpu.pipeline_mode<synchronous>, transform_indices = @transform_2, window_bounds = array<i64: 1, 4>}, {transform_indices = @transform_3, window_bounds = array<i64: 1, 8, 16, 4>}]} {
    %c0 = arith.constant 0 : index
    %c0_0 = arith.constant 0 : index
    %0 = vector.load %arg3[%c0, %c0_0] : memref<1x4xf32, #tpu.memory_space<vmem>>, vector<1x4xf32>
    %1 = vector.shape_cast %0 : vector<1x4xf32> to vector<1x1x1x4xf32>
    %c0_1 = arith.constant 0 : index
    %c0_2 = arith.constant 0 : index
    %2 = vector.load %arg4[%c0_1, %c0_2] : memref<1x4xf32, #tpu.memory_space<vmem>>, vector<1x4xf32>
    %3 = vector.shape_cast %2 : vector<1x4xf32> to vector<1x1x1x4xf32>
    %c0_3 = arith.constant 0 : index
    %c0_4 = arith.constant 0 : index
    %c0_5 = arith.constant 0 : index
    %c0_6 = arith.constant 0 : index
    %4 = vector.load %arg2[%c0_3, %c0_4, %c0_5, %c0_6] : memref<1x8x16x4xf32, #tpu.memory_space<vmem>>, vector<1x8x16x4xf32>
    %5 = vector.broadcast %1 : vector<1x1x1x4xf32> to vector<1x8x16x4xf32>
    %6 = arith.mulf %4, %5 : vector<1x8x16x4xf32>
    %7 = vector.broadcast %3 : vector<1x1x1x4xf32> to vector<1x8x16x4xf32>
    %8 = arith.addf %6, %7 : vector<1x8x16x4xf32>
    %cst = arith.constant 0.000000e+00 : f32
    %9 = vector.broadcast %cst : f32 to vector<1x8x16x4xf32>
    %10 = arith.maximumf %8, %9 : vector<1x8x16x4xf32>
    %c0_7 = arith.constant 0 : index
    %c0_8 = arith.constant 0 : index
    %c0_9 = arith.constant 0 : index
    %c0_10 = arith.constant 0 : index
    %11 = vector.load %arg5[%c0_7, %c0_8, %c0_9, %c0_10] : memref<1x8x16x4xf32, #tpu.memory_space<vmem>>, vector<1x8x16x4xf32>
    tpu.vector_store %arg5[%c0_7, %c0_8, %c0_9, %c0_10], %10 {strides = array<i32>} : memref<1x8x16x4xf32, #tpu.memory_space<vmem>>, vector<1x8x16x4xf32>,
    return
  }
  func.func @transform_0(%arg0: i32, %arg1: i32) -> (i32, i32, i32, i32) {
    %c0_i32 = arith.constant 0 : i32
    %c0_i32_0 = arith.constant 0 : i32
    %c0_i32_1 = arith.constant 0 : i32
    return %arg0, %arg1, %c0_i32, %c0_i32_0 : i32, i32, i32, i32
  }
  func.func @transform_1(%arg0: i32, %arg1: i32) -> (i32, i32) {
    %c0_i32 = arith.constant 0 : i32
    %c0_i32_0 = arith.constant 0 : i32
    %c0_i32_1 = arith.constant 0 : i32
    return %c0_i32, %c0_i32_0 : i32, i32
  }
  func.func @transform_2(%arg0: i32, %arg1: i32) -> (i32, i32) {
    %c0_i32 = arith.constant 0 : i32
    %c0_i32_0 = arith.constant 0 : i32
    %c0_i32_1 = arith.constant 0 : i32
    return %c0_i32, %c0_i32_0 : i32, i32
  }
  func.func @transform_3(%arg0: i32, %arg1: i32) -> (i32, i32, i32, i32) {
    %c0_i32 = arith.constant 0 : i32
    %c0_i32_0 = arith.constant 0 : i32
    %c0_i32_1 = arith.constant 0 : i32
    return %arg0, %arg1, %c0_i32, %c0_i32_0 : i32, i32, i32, i32
  }
}

</mosaic_0001>

<llo_original>
// kernel: akfb_forward.3
$region0: #{akfb_forward.3}
  #allocation0 [shape = 'u32[]', space=smem, size = 0x4, offset = 0x4, fixed_abs, tag = 'smem constant byte address 0x4 - core index']
  #allocation1 [shape = 'u32[144,128]{1,0:T(1,128)}', space=vmem, size = 0x12000, scoped, tag = 'internal scratch']
  %s0 = inlined_call_operand.vmem [shape: f32[2,16,16,4], index: 0, kind: input, shape index: {}, may-alias: {0,3}]
  %s1 = inlined_call_operand.vmem [shape: f32[1,4], index: 1, kind: input, shape index: {}]
  %s2 = inlined_call_operand.vmem [shape: f32[1,4], index: 2, kind: input, shape index: {}]
  %s3 = inlined_call_operand.vmem [shape: f32[2,16,16,4], index: 3, kind: output, shape index: {}, may-alias: {0,3}]
  %s4 = sld [smem:[#allocation0]]
  $region45: #{akfb_forward.3} parent=0
    _
  %s6 = ssub.s32 1, %s4
  %s7 = scalar_select 0, %s6, %s4
  loop: start=0, step=1, limit=6
  $region2: #{akfb_forward.3} parent=0 // loop_pre_header
    _
  $region3: #{akfb_forward.3} parent=0 // loop_header
    %s9 = sphi 0, %s13
    %p10 = scmp.ge.s32.totalorder %s9, 6
    %s16 = sphi 0, %s28
    %s17 = sphi 0, %s24
    %s18 = sphi 0, %s16
    %s19 = sphi 0, %s17
    %s20 = sphi 0, %s18
    %s21 = sphi 0, %s19
    %s33 = sphi 0, %s35
    %s36 = sphi 0, %s33
    %s37 = sphi 0, %s36
    %s53 = sphi 0, %s37
    %s57 = sphi 0, %s57
    %s59 = sphi 0, %s57
    %s60 = sphi 0, %s59
    %s74 = sphi 0, %s60
    %s78 = sphi 0, %s78
    %s80 = sphi 0, %s78
    %s81 = sphi 0, %s80
    %s95 = sphi 0, %s81
    %s103 = sphi 0, %s105
    %s106 = sphi 0, %s103
    %s107 = sphi 0, %s106
    %s123 = sphi 0, %s107
  $region4: #{akfb_forward.3} parent=0 // loop_header_branch
    %12 = sbr.rel (%p10) target = $region8
  $region5: #{akfb_forward.3} parent=0 // loop_body
    %s14 = ssub.s32 %s9, 1
    %s15 = ssub.s32 %s9, 2
    %s22 = sadd.s32 1, %s17
    %p23 = scmp.ge.s32.totalorder %s22, 2
    %s24 = scalar_select %p23, 0, %s22
    %s25 = sadd.s32 1, %s16
    %s26 = scalar_select %p23, %s25, %s16
    %p27 = scmp.ge.s32.totalorder %s26, 2
    %s28 = scalar_select %p27, 0, %s26
    %s29 = ssub.s32 %s16, %s28
    %s30 = ssub.s32 %s17, %s24
    %s31 = sor.u32 %s29, %s30
    %p32 = scmp.eq.s32.totalorder %s31, 0
    %s34 = sadd.s32 %s33, 1
    %s35 = scalar_select %p32, %s33, %s34
    %p38 = pneg %p32
    %p39 = scmp.eq.s32.totalorder %s9, 3
    %p40 = por %p38, %p39
    %p41 = scmp.ne.s32.totalorder %s33, %s36
    %p42 = scmp.eq.s32.totalorder %s9, 0
    %p43 = por %p41, %p42
    %p44 = scmp.ne.s32.totalorder %s33, %s36
    %p45 = scmp.eq.s32.totalorder %s14, 3
    %p46 = por %p44, %p45
    %p47 = scmp.ne.s32.totalorder %s36, %s37
    %p48 = scmp.eq.s32.totalorder %s14, 0
    %p49 = por %p47, %p48
    %p50 = scmp.ne.s32.totalorder %s36, %s37
    %p51 = scmp.eq.s32.totalorder %s15, 3
    %p52 = por %p50, %p51
    %p54 = scmp.ne.s32.totalorder %s37, %s53
    %p55 = scmp.eq.s32.totalorder %s15, 0
    %p56 = por %p54, %p55
    %s58 = sadd.s32 %s57, 1
    %p61 = scmp.eq.s32.totalorder %s9, 3
    %p62 = scmp.ne.s32.totalorder %s57, %s59
    %p63 = scmp.eq.s32.totalorder %s9, 0
    %p64 = por %p62, %p63
    %p65 = scmp.ne.s32.totalorder %s57, %s59
    %p66 = scmp.eq.s32.totalorder %s14, 3
    %p67 = por %p65, %p66
    %p68 = scmp.ne.s32.totalorder %s59, %s60
    %p69 = scmp.eq.s32.totalorder %s14, 0
    %p70 = por %p68, %p69
    %p71 = scmp.ne.s32.totalorder %s59, %s60
    %p72 = scmp.eq.s32.totalorder %s15, 3
    %p73 = por %p71, %p72
    %p75 = scmp.ne.s32.totalorder %s60, %s74
    %p76 = scmp.eq.s32.totalorder %s15, 0
    %p77 = por %p75, %p76
    %s79 = sadd.s32 %s78, 1
    %p82 = scmp.eq.s32.totalorder %s9, 3
    %p83 = scmp.ne.s32.totalorder %s78, %s80
    %p84 = scmp.eq.s32.totalorder %s9, 0
    %p85 = por %p83, %p84
    %p86 = scmp.ne.s32.totalorder %s78, %s80
    %p87 = scmp.eq.s32.totalorder %s14, 3
    %p88 = por %p86, %p87
    %p89 = scmp.ne.s32.totalorder %s80, %s81
    %p90 = scmp.eq.s32.totalorder %s14, 0
    %p91 = por %p89, %p90
    %p92 = scmp.ne.s32.totalorder %s80, %s81
    %p93 = scmp.eq.s32.totalorder %s15, 3
    %p94 = por %p92, %p93
    %p96 = scmp.ne.s32.totalorder %s81, %s95
    %p97 = scmp.eq.s32.totalorder %s15, 0
    %p98 = por %p96, %p97
    %s99 = ssub.s32 %s16, %s28
    %s100 = ssub.s32 %s17, %s24
    %s101 = sor.u32 %s99, %s100
    %p102 = scmp.eq.s32.totalorder %s101, 0
    %s104 = sadd.s32 %s103, 1
    %s105 = scalar_select %p102, %s103, %s104
    %p108 = pneg %p102
    %p109 = scmp.eq.s32.totalorder %s9, 3
    %p110 = por %p108, %p109
    %p111 = scmp.ne.s32.totalorder %s103, %s106
    %p112 = scmp.eq.s32.totalorder %s9, 0
    %p113 = por %p111, %p112
    %p114 = scmp.ne.s32.totalorder %s103, %s106
    %p115 = scmp.eq.s32.totalorder %s14, 3
    %p116 = por %p114, %p115
    %p117 = scmp.ne.s32.totalorder %s106, %s107
    %p118 = scmp.eq.s32.totalorder %s14, 0
    %p119 = por %p117, %p118
    %p120 = scmp.ne.s32.totalorder %s106, %s107
    %p121 = scmp.eq.s32.totalorder %s15, 3
    %p122 = por %p120, %p121
    %p124 = scmp.ne.s32.totalorder %s107, %s123
    %p125 = scmp.eq.s32.totalorder %s15, 0
    %p126 = por %p124, %p125
    %p127 = scmp.le.s32.totalorder 1, %s9
    %p128 = scmp.lt.s32.totalorder %s9, 5
    %p129 = pnand %p127, %p128
    %p130 = pneg %p129
    // Predicated region
    $region9: #{akfb_forward.3} parent=5 // pred_check
      _
    $region10: #{akfb_forward.3} parent=5 // pred_check_branch
      %132 = sbr.rel (%p129) target = $region12
    $region11: #{akfb_forward.3} parent=5 // pred_region
      %s133 = ssub.s32 %s9, 1
      // Predicated region
      $region13: #{akfb_forward.3} parent=11 // pred_check
        %p134 = pneg %p70
      $region14: #{akfb_forward.3} parent=11 // pred_check_branch
        %136 = sbr.rel (%p134) target = $region16
      $region15: #{akfb_forward.3} parent=11 // pred_region
        _
      $region16: #{akfb_forward.3} parent=11 // pred_fallthru
        _
      // Predicated region
      $region17: #{akfb_forward.3} parent=11 // pred_check
        %p137 = pneg %p91
      $region18: #{akfb_forward.3} parent=11 // pred_check_branch
        %139 = sbr.rel (%p137) target = $region20
      $region19: #{akfb_forward.3} parent=11 // pred_region
        _
      $region20: #{akfb_forward.3} parent=11 // pred_fallthru
        _
    $region12: #{akfb_forward.3} parent=5 // pred_fallthru
      _
    %p140 = scmp.lt.s32.totalorder %s9, 4
    // Predicated region
    $region21: #{akfb_forward.3} parent=5 // pred_check
      %p141 = pneg %p140
    $region22: #{akfb_forward.3} parent=5 // pred_check_branch
      %143 = sbr.rel (%p141) target = $region24
    $region23: #{akfb_forward.3} parent=5 // pred_region
      // Predicated region
      $region25: #{akfb_forward.3} parent=23 // pred_check
        %p144 = pneg %p43
      $region26: #{akfb_forward.3} parent=23 // pred_check_branch
        %146 = sbr.rel (%p144) target = $region28
      $region27: #{akfb_forward.3} parent=23 // pred_region
        %s147 = smul.u32 8, %s17
        %p148 = scmp.lt.s32.totalorder %s16, 1
        %s149 = scalar_select %p148, %s16, 1
        %p150 = scmp.lt.s32.totalorder %s147, 15
        %s151 = scalar_select %p150, %s147, 15
        %s152 = smul.addr %s151, 2
        %s153 = smul.addr %s149, 32
        %s154 = sadd.s32 %s152, %s153
        %s155 = smul.addr %s154, 8
        %s156 = scalar_lea.vmem %s0, %s155
        %s157 = smul.u32 8, %s17
      $region28: #{akfb_forward.3} parent=23 // pred_fallthru
        _
    $region24: #{akfb_forward.3} parent=5 // pred_fallthru
      _
    %p158 = scmp.le.s32.totalorder 1, %s9
    %p159 = scmp.lt.s32.totalorder %s9, 5
    %p160 = pnand %p158, %p159
    %p161 = pneg %p160
    // Predicated region
    $region29: #{akfb_forward.3} parent=5 // pred_check
      _
    $region30: #{akfb_forward.3} parent=5 // pred_check_branch
      %163 = sbr.rel (%p160) target = $region32
    $region31: #{akfb_forward.3} parent=5 // pred_region
      %s164 = ssub.s32 %s9, 1
      %s165 = smul.u32 8, %s19
      %p166 = scmp.lt.s32.totalorder %s18, 1
      %s167 = scalar_select %p166, %s18, 1
      %p168 = scmp.lt.s32.totalorder %s165, 15
      %s169 = scalar_select %p168, %s165, 15
      %s170 = smul.addr %s169, 2
      %s171 = smul.addr %s167, 32
      %s172 = sadd.s32 %s170, %s171
      %s173 = smul.addr %s172, 8
      %s174 = scalar_lea.vmem %s0, %s173
      %p175 = pneg %p49
      %p176 = pneg %p46
      %p177 = pneg %p70
      %p178 = pneg %p67
      %p179 = pneg %p91
      %p180 = pneg %p88
      %p181 = pneg %p119
      %p182 = pneg %p116
      %s183 = smul.u32 8, %s19
      %p184 = scmp.lt.s32.totalorder %s18, 1
      %s185 = scalar_select %p184, %s18, 1
      %p186 = scmp.lt.s32.totalorder %s183, 15
      %s187 = scalar_select %p186, %s183, 15
      %s188 = smul.addr %s187, 2
      %s189 = smul.addr %s185, 32
      %s190 = sadd.s32 %s188, %s189
      %s191 = smul.addr %s190, 8
      %s192 = scalar_lea.vmem %s3, %s191
      %s193 = smul.u32 8, %s19
      %p194 = scmp.lt.s32.totalorder %s18, 1
      %s195 = scalar_select %p194, %s18, 1
      %p196 = scmp.lt.s32.totalorder %s193, 15
      %s197 = scalar_select %p196, %s193, 15
      %s198 = smul.addr %s197, 2
      %s199 = smul.addr %s195, 32
      %s200 = sadd.s32 %s198, %s199
      %s201 = smul.addr %s200, 8
      %s202 = scalar_lea.vmem %s0, %s201
      %s203 = smul.u32 8, %s19
      %s204 = smul.u32 8, %s19
      %p205 = scmp.lt.s32.totalorder %s18, 1
      %s206 = scalar_select %p205, %s18, 1
      %p207 = scmp.lt.s32.totalorder %s204, 15
      %s208 = scalar_select %p207, %s204, 15
      %s209 = smul.addr %s208, 2
      %s210 = smul.addr %s206, 32
      %s211 = sadd.s32 %s209, %s210
      %s212 = smul.addr %s211, 8
      %s213 = scalar_lea.vmem %s3, %s212
      %s214 = smul.u32 8, %s19
      %v215 = vld [vmem:[%s1] sm:$0x1]
      %v216 = vld [vmem:[%s2] sm:$0x1]
      %v217 = vld [vmem:[%s202] sm:$0xff]
      %v218 = vld [vmem:[%s202 + $0x8] sm:$0xff]
      %v219 = vld [vmem:[%s202 + $0x10] sm:$0xff]
      %v220 = vld [vmem:[%s202 + $0x18] sm:$0xff]
      %v221 = vld [vmem:[%s202 + $0x20] sm:$0xff]
      %v222 = vld [vmem:[%s202 + $0x28] sm:$0xff]
      %v223 = vld [vmem:[%s202 + $0x30] sm:$0xff]
      %v224 = vld [vmem:[%s202 + $0x38] sm:$0xff]
      %v225 = vld [vmem:[%s202 + $0x40] sm:$0xff]
      %v226 = vld [vmem:[%s202 + $0x48] sm:$0xff]
      %v227 = vld [vmem:[%s202 + $0x50] sm:$0xff]
      %v228 = vld [vmem:[%s202 + $0x58] sm:$0xff]
      %v229 = vld [vmem:[%s202 + $0x60] sm:$0xff]
      %v230 = vld [vmem:[%s202 + $0x68] sm:$0xff]
      %v231 = vld [vmem:[%s202 + $0x70] sm:$0xff]
      %v232 = vld [vmem:[%s202 + $0x78] sm:$0xff]
      %v234 = vlaneseq
      %v235 = vshrl.u32 %v234, 7
      %v236 = vsub.s32 0, %v235
      %v237 = vrot.slane %v215, %v236
      %v239 = vmul.f32 %v217, %v237
      %v240 = vmul.f32 %v218, %v237
      %v241 = vmul.f32 %v219, %v237
      %v242 = vmul.f32 %v220, %v237
      %v243 = vmul.f32 %v221, %v237
      %v244 = vmul.f32 %v222, %v237
      %v245 = vmul.f32 %v223, %v237
      %v246 = vmul.f32 %v224, %v237
      %v247 = vmul.f32 %v225, %v237
      %v248 = vmul.f32 %v226, %v237
      %v249 = vmul.f32 %v227, %v237
      %v250 = vmul.f32 %v228, %v237
      %v251 = vmul.f32 %v229, %v237
      %v252 = vmul.f32 %v230, %v237
      %v253 = vmul.f32 %v231, %v237
      %v254 = vmul.f32 %v232, %v237
      %v256 = vlaneseq
      %v257 = vshrl.u32 %v256, 7
      %v258 = vsub.s32 0, %v257
      %v259 = vrot.slane %v216, %v258
      %v261 = vadd.f32 %v239, %v259
      %v262 = vadd.f32 %v240, %v259
      %v263 = vadd.f32 %v241, %v259
      %v264 = vadd.f32 %v242, %v259
      %v265 = vadd.f32 %v243, %v259
      %v266 = vadd.f32 %v244, %v259
      %v267 = vadd.f32 %v245, %v259
      %v268 = vadd.f32 %v246, %v259
      %v269 = vadd.f32 %v247, %v259
      %v270 = vadd.f32 %v248, %v259
      %v271 = vadd.f32 %v249, %v259
      %v272 = vadd.f32 %v250, %v259
      %v273 = vadd.f32 %v251, %v259
      %v274 = vadd.f32 %v252, %v259
      %v275 = vadd.f32 %v253, %v259
      %v276 = vadd.f32 %v254, %v259
      %v277 = vmax.f32 %v261, 0.0
      %v278 = vmax.f32 %v262, 0.0
      %v279 = vmax.f32 %v263, 0.0
      %v280 = vmax.f32 %v264, 0.0
      %v281 = vmax.f32 %v265, 0.0
      %v282 = vmax.f32 %v266, 0.0
      %v283 = vmax.f32 %v267, 0.0
      %v284 = vmax.f32 %v268, 0.0
      %v285 = vmax.f32 %v269, 0.0
      %v286 = vmax.f32 %v270, 0.0
      %v287 = vmax.f32 %v271, 0.0
      %v288 = vmax.f32 %v272, 0.0
      %v289 = vmax.f32 %v273, 0.0
      %v290 = vmax.f32 %v274, 0.0
      %v291 = vmax.f32 %v275, 0.0
      %v292 = vmax.f32 %v276, 0.0
      %vm293 = vcmask 31744
      %294 = vst.msk [vmem:[%s213] sm:$0xff] %vm293, %v277
      %295 = vst.msk [vmem:[%s213 + $0x8] sm:$0xff] %vm293, %v278
      %296 = vst.msk [vmem:[%s213 + $0x10] sm:$0xff] %vm293, %v279
      %297 = vst.msk [vmem:[%s213 + $0x18] sm:$0xff] %vm293, %v280
      %298 = vst.msk [vmem:[%s213 + $0x20] sm:$0xff] %vm293, %v281
      %299 = vst.msk [vmem:[%s213 + $0x28] sm:$0xff] %vm293, %v282
      %300 = vst.msk [vmem:[%s213 + $0x30] sm:$0xff] %vm293, %v283
      %301 = vst.msk [vmem:[%s213 + $0x38] sm:$0xff] %vm293, %v284
      %302 = vst.msk [vmem:[%s213 + $0x40] sm:$0xff] %vm293, %v285
      %303 = vst.msk [vmem:[%s213 + $0x48] sm:$0xff] %vm293, %v286
      %304 = vst.msk [vmem:[%s213 + $0x50] sm:$0xff] %vm293, %v287
      %305 = vst.msk [vmem:[%s213 + $0x58] sm:$0xff] %vm293, %v288
      %306 = vst.msk [vmem:[%s213 + $0x60] sm:$0xff] %vm293, %v289
      %307 = vst.msk [vmem:[%s213 + $0x68] sm:$0xff] %vm293, %v290
      %308 = vst.msk [vmem:[%s213 + $0x70] sm:$0xff] %vm293, %v291
      %309 = vst.msk [vmem:[%s213 + $0x78] sm:$0xff] %vm293, %v292
      %s310 = smul.u32 8, %s19
      %p311 = scmp.lt.s32.totalorder %s18, 1
      %s312 = scalar_select %p311, %s18, 1
      %p313 = scmp.lt.s32.totalorder %s310, 15
      %s314 = scalar_select %p313, %s310, 15
      %s315 = smul.addr %s314, 2
      %s316 = smul.addr %s312, 32
      %s317 = sadd.s32 %s315, %s316
      %s318 = smul.addr %s317, 8
      %s319 = scalar_lea.vmem %s3, %s318
      // Predicated region
      $region33: #{akfb_forward.3} parent=31 // pred_check
        %p320 = pneg %p116
      $region34: #{akfb_forward.3} parent=31 // pred_check_branch
        %322 = sbr.rel (%p320) target = $region36
      $region35: #{akfb_forward.3} parent=31 // pred_region
        %s323 = smul.u32 8, %s19
      $region36: #{akfb_forward.3} parent=31 // pred_fallthru
        _
    $region32: #{akfb_forward.3} parent=5 // pred_fallthru
      _
    %p324 = scmp.le.s32.totalorder 2, %s9
    // Predicated region
    $region37: #{akfb_forward.3} parent=5 // pred_check
      %p325 = pneg %p324
    $region38: #{akfb_forward.3} parent=5 // pred_check_branch
      %327 = sbr.rel (%p325) target = $region40
    $region39: #{akfb_forward.3} parent=5 // pred_region
      %s328 = ssub.s32 %s9, 2
      // Predicated region
      $region41: #{akfb_forward.3} parent=39 // pred_check
        %p329 = pneg %p122
      $region42: #{akfb_forward.3} parent=39 // pred_check_branch
        %331 = sbr.rel (%p329) target = $region44
      $region43: #{akfb_forward.3} parent=39 // pred_region
        %s332 = smul.u32 8, %s21
        %p333 = scmp.lt.s32.totalorder %s20, 1
        %s334 = scalar_select %p333, %s20, 1
        %p335 = scmp.lt.s32.totalorder %s332, 15
        %s336 = scalar_select %p335, %s332, 15
        %s337 = smul.addr %s336, 2
        %s338 = smul.addr %s334, 32
        %s339 = sadd.s32 %s337, %s338
        %s340 = smul.addr %s339, 8
        %s341 = scalar_lea.vmem %s3, %s340
      $region44: #{akfb_forward.3} parent=39 // pred_fallthru
        _
    $region40: #{akfb_forward.3} parent=5 // pred_fallthru
      _
  $region6: #{akfb_forward.3} parent=0 // loop_footer
    %s13 = sadd.s32 1, %s9
  $region7: #{akfb_forward.3} parent=0 // loop_footer_branch
    %8 = sbr.rel target = $region3
  $region8: #{akfb_forward.3} parent=0 // loop_exit
    _

// kernel: akfb_forward.2
$region0: #{akfb_forward.2}
  #allocation0 [shape = 'u32[]', space=smem, size = 0x4, offset = 0x4, fixed_abs, tag = 'smem constant byte address 0x4 - core index']
  #allocation1 [shape = 'u32[144,128]{1,0:T(1,128)}', space=vmem, size = 0x12000, scoped, tag = 'internal scratch']
  %s0 = inlined_call_operand.vmem [shape: f32[4,12,20,4], index: 0, kind: input, shape index: {}]
  %s1 = inlined_call_operand.vmem [shape: f32[2,9,4], index: 1, kind: input, shape index: {}]
  %s2 = inlined_call_operand.vmem [shape: f32[2,9,4], index: 2, kind: input, shape index: {}]
  %s3 = inlined_call_operand.vmem [shape: f32[4,4], index: 3, kind: input, shape index: {}]
  %s4 = inlined_call_operand.vmem [shape: f32[2,16,16,4], index: 4, kind: output, shape index: {0}]
  %s5 = inlined_call_operand.vmem [shape: f32[4,1,4], index: 5, kind: output, shape index: {1}]
  %s6 = inlined_call_operand.vmem [shape: f32[4,1,4], index: 6, kind: output, shape index: {2}]
  %7 = xla_tuple %s4, %s5, %s6
  %s8 = sld [smem:[#allocation0]]
  $region65: #{akfb_forward.2} parent=0
    _
  %s10 = ssub.s32 1, %s8
  %s11 = scalar_select 0, %s10, %s8
  loop: start=0, step=1, limit=6
  $region2: #{akfb_forward.2} parent=0 // loop_pre_header
    _
  $region3: #{akfb_forward.2} parent=0 // loop_header
    %s13 = sphi 0, %s17
    %p14 = scmp.ge.s32.totalorder %s13, 6
    %s20 = sphi 0, %s32
    %s21 = sphi 0, %s28
    %s22 = sphi 0, %s20
    %s23 = sphi 0, %s21
    %s24 = sphi 0, %s22
    %s25 = sphi 0, %s23
    %s39 = sphi 0, %s41
    %s42 = sphi 0, %s39
    %s43 = sphi 0, %s42
    %s59 = sphi 0, %s43
    %s65 = sphi 0, %s67
    %s68 = sphi 0, %s65
    %s69 = sphi 0, %s68
    %s85 = sphi 0, %s69
    %s91 = sphi 0, %s93
    %s94 = sphi 0, %s91
    %s95 = sphi 0, %s94
    %s111 = sphi 0, %s95
    %s115 = sphi 0, %s115
    %s117 = sphi 0, %s115
    %s118 = sphi 0, %s117
    %s132 = sphi 0, %s118
    %s140 = sphi 0, %s142
    %s143 = sphi 0, %s140
    %s144 = sphi 0, %s143
    %s160 = sphi 0, %s144
    %s170 = sphi 0, %s172
    %s173 = sphi 0, %s170
    %s174 = sphi 0, %s173
    %s190 = sphi 0, %s174
    %s200 = sphi 0, %s202
    %s203 = sphi 0, %s200
    %s204 = sphi 0, %s203
    %s220 = sphi 0, %s204
  $region4: #{akfb_forward.2} parent=0 // loop_header_branch
    %16 = sbr.rel (%p14) target = $region8
  $region5: #{akfb_forward.2} parent=0 // loop_body
    %s18 = ssub.s32 %s13, 1
    %s19 = ssub.s32 %s13, 2
    %s26 = sadd.s32 1, %s21
    %p27 = scmp.ge.s32.totalorder %s26, 2
    %s28 = scalar_select %p27, 0, %s26
    %s29 = sadd.s32 1, %s20
    %s30 = scalar_select %p27, %s29, %s20
    %p31 = scmp.ge.s32.totalorder %s30, 2
    %s32 = scalar_select %p31, 0, %s30
    %s33 = smul.u32 %s20, 2
    %s34 = sadd.s32 %s33, %s21
    %s35 = smul.u32 %s32, 2
    %s36 = sadd.s32 %s35, %s28
    %s37 = ssub.s32 %s34, %s36
    %p38 = scmp.eq.s32.totalorder %s37, 0
    %s40 = sadd.s32 %s39, 1
    %s41 = scalar_select %p38, %s39, %s40
    %p44 = pneg %p38
    %p45 = scmp.eq.s32.totalorder %s13, 3
    %p46 = por %p44, %p45
    %p47 = scmp.ne.s32.totalorder %s39, %s42
    %p48 = scmp.eq.s32.totalorder %s13, 0
    %p49 = por %p47, %p48
    %p50 = scmp.ne.s32.totalorder %s39, %s42
    %p51 = scmp.eq.s32.totalorder %s18, 3
    %p52 = por %p50, %p51
    %p53 = scmp.ne.s32.totalorder %s42, %s43
    %p54 = scmp.eq.s32.totalorder %s18, 0
    %p55 = por %p53, %p54
    %p56 = scmp.ne.s32.totalorder %s42, %s43
    %p57 = scmp.eq.s32.totalorder %s19, 3
    %p58 = por %p56, %p57
    %p60 = scmp.ne.s32.totalorder %s43, %s59
    %p61 = scmp.eq.s32.totalorder %s19, 0
    %p62 = por %p60, %p61
    %s63 = ssub.s32 %s20, %s32
    %p64 = scmp.eq.s32.totalorder %s63, 0
    %s66 = sadd.s32 %s65, 1
    %s67 = scalar_select %p64, %s65, %s66
    %p70 = pneg %p64
    %p71 = scmp.eq.s32.totalorder %s13, 3
    %p72 = por %p70, %p71
    %p73 = scmp.ne.s32.totalorder %s65, %s68
    %p74 = scmp.eq.s32.totalorder %s13, 0
    %p75 = por %p73, %p74
    %p76 = scmp.ne.s32.totalorder %s65, %s68
    %p77 = scmp.eq.s32.totalorder %s18, 3
    %p78 = por %p76, %p77
    %p79 = scmp.ne.s32.totalorder %s68, %s69
    %p80 = scmp.eq.s32.totalorder %s18, 0
    %p81 = por %p79, %p80
    %p82 = scmp.ne.s32.totalorder %s68, %s69
    %p83 = scmp.eq.s32.totalorder %s19, 3
    %p84 = por %p82, %p83
    %p86 = scmp.ne.s32.totalorder %s69, %s85
    %p87 = scmp.eq.s32.totalorder %s19, 0
    %p88 = por %p86, %p87
    %s89 = ssub.s32 %s20, %s32
    %p90 = scmp.eq.s32.totalorder %s89, 0
    %s92 = sadd.s32 %s91, 1
    %s93 = scalar_select %p90, %s91, %s92
    %p96 = pneg %p90
    %p97 = scmp.eq.s32.totalorder %s13, 3
    %p98 = por %p96, %p97
    %p99 = scmp.ne.s32.totalorder %s91, %s94
    %p100 = scmp.eq.s32.totalorder %s13, 0
    %p101 = por %p99, %p100
    %p102 = scmp.ne.s32.totalorder %s91, %s94
    %p103 = scmp.eq.s32.totalorder %s18, 3
    %p104 = por %p102, %p103
    %p105 = scmp.ne.s32.totalorder %s94, %s95
    %p106 = scmp.eq.s32.totalorder %s18, 0
    %p107 = por %p105, %p106
    %p108 = scmp.ne.s32.totalorder %s94, %s95
    %p109 = scmp.eq.s32.totalorder %s19, 3
    %p110 = por %p108, %p109
    %p112 = scmp.ne.s32.totalorder %s95, %s111
    %p113 = scmp.eq.s32.totalorder %s19, 0
    %p114 = por %p112, %p113
    %s116 = sadd.s32 %s115, 1
    %p119 = scmp.eq.s32.totalorder %s13, 3
    %p120 = scmp.ne.s32.totalorder %s115, %s117
    %p121 = scmp.eq.s32.totalorder %s13, 0
    %p122 = por %p120, %p121
    %p123 = scmp.ne.s32.totalorder %s115, %s117
    %p124 = scmp.eq.s32.totalorder %s18, 3
    %p125 = por %p123, %p124
    %p126 = scmp.ne.s32.totalorder %s117, %s118
    %p127 = scmp.eq.s32.totalorder %s18, 0
    %p128 = por %p126, %p127
    %p129 = scmp.ne.s32.totalorder %s117, %s118
    %p130 = scmp.eq.s32.totalorder %s19, 3
    %p131 = por %p129, %p130
    %p133 = scmp.ne.s32.totalorder %s118, %s132
    %p134 = scmp.eq.s32.totalorder %s19, 0
    %p135 = por %p133, %p134
    %s136 = ssub.s32 %s20, %s32
    %s137 = ssub.s32 %s21, %s28
    %s138 = sor.u32 %s136, %s137
    %p139 = scmp.eq.s32.totalorder %s138, 0
    %s141 = sadd.s32 %s140, 1
    %s142 = scalar_select %p139, %s140, %s141
    %p145 = pneg %p139
    %p146 = scmp.eq.s32.totalorder %s13, 3
    %p147 = por %p145, %p146
    %p148 = scmp.ne.s32.totalorder %s140, %s143
    %p149 = scmp.eq.s32.totalorder %s13, 0
    %p150 = por %p148, %p149
    %p151 = scmp.ne.s32.totalorder %s140, %s143
    %p152 = scmp.eq.s32.totalorder %s18, 3
    %p153 = por %p151, %p152
    %p154 = scmp.ne.s32.totalorder %s143, %s144
    %p155 = scmp.eq.s32.totalorder %s18, 0
    %p156 = por %p154, %p155
    %p157 = scmp.ne.s32.totalorder %s143, %s144
    %p158 = scmp.eq.s32.totalorder %s19, 3
    %p159 = por %p157, %p158
    %p161 = scmp.ne.s32.totalorder %s144, %s160
    %p162 = scmp.eq.s32.totalorder %s19, 0
    %p163 = por %p161, %p162
    %s164 = smul.u32 %s20, 2
    %s165 = sadd.s32 %s164, %s21
    %s166 = smul.u32 %s32, 2
    %s167 = sadd.s32 %s166, %s28
    %s168 = ssub.s32 %s165, %s167
    %p169 = scmp.eq.s32.totalorder %s168, 0
    %s171 = sadd.s32 %s170, 1
    %s172 = scalar_select %p169, %s170, %s171
    %p175 = pneg %p169
    %p176 = scmp.eq.s32.totalorder %s13, 3
    %p177 = por %p175, %p176
    %p178 = scmp.ne.s32.totalorder %s170, %s173
    %p179 = scmp.eq.s32.totalorder %s13, 0
    %p180 = por %p178, %p179
    %p181 = scmp.ne.s32.totalorder %s170, %s173
    %p182 = scmp.eq.s32.totalorder %s18, 3
    %p183 = por %p181, %p182
    %p184 = scmp.ne.s32.totalorder %s173, %s174
    %p185 = scmp.eq.s32.totalorder %s18, 0
    %p186 = por %p184, %p185
    %p187 = scmp.ne.s32.totalorder %s173, %s174
    %p188 = scmp.eq.s32.totalorder %s19, 3
    %p189 = por %p187, %p188
    %p191 = scmp.ne.s32.totalorder %s174, %s190
    %p192 = scmp.eq.s32.totalorder %s19, 0
    %p193 = por %p191, %p192
    %s194 = smul.u32 %s20, 2
    %s195 = sadd.s32 %s194, %s21
    %s196 = smul.u32 %s32, 2
    %s197 = sadd.s32 %s196, %s28
    %s198 = ssub.s32 %s195, %s197
    %p199 = scmp.eq.s32.totalorder %s198, 0
    %s201 = sadd.s32 %s200, 1
    %s202 = scalar_select %p199, %s200, %s201
    %p205 = pneg %p199
    %p206 = scmp.eq.s32.totalorder %s13, 3
    %p207 = por %p205, %p206
    %p208 = scmp.ne.s32.totalorder %s200, %s203
    %p209 = scmp.eq.s32.totalorder %s13, 0
    %p210 = por %p208, %p209
    %p211 = scmp.ne.s32.totalorder %s200, %s203
    %p212 = scmp.eq.s32.totalorder %s18, 3
    %p213 = por %p211, %p212
    %p214 = scmp.ne.s32.totalorder %s203, %s204
    %p215 = scmp.eq.s32.totalorder %s18, 0
    %p216 = por %p214, %p215
    %p217 = scmp.ne.s32.totalorder %s203, %s204
    %p218 = scmp.eq.s32.totalorder %s19, 3
    %p219 = por %p217, %p218
    %p221 = scmp.ne.s32.totalorder %s204, %s220
    %p222 = scmp.eq.s32.totalorder %s19, 0
    %p223 = por %p221, %p222
    %p224 = scmp.le.s32.totalorder 1, %s13
    %p225 = scmp.lt.s32.totalorder %s13, 5
    %p226 = pnand %p224, %p225
    %p227 = pneg %p226
    // Predicated region
    $region9: #{akfb_forward.2} parent=5 // pred_check
      _
    $region10: #{akfb_forward.2} parent=5 // pred_check_branch
      %229 = sbr.rel (%p226) target = $region12
    $region11: #{akfb_forward.2} parent=5 // pred_region
      %s230 = ssub.s32 %s13, 1
      // Predicated region
      $region13: #{akfb_forward.2} parent=11 // pred_check
        %p231 = pneg %p128
      $region14: #{akfb_forward.2} parent=11 // pred_check_branch
        %233 = sbr.rel (%p231) target = $region16
      $region15: #{akfb_forward.2} parent=11 // pred_region
        _
      $region16: #{akfb_forward.2} parent=11 // pred_fallthru
        _
    $region12: #{akfb_forward.2} parent=5 // pred_fallthru
      _
    %p234 = scmp.lt.s32.totalorder %s13, 4
    // Predicated region
    $region17: #{akfb_forward.2} parent=5 // pred_check
      %p235 = pneg %p234
    $region18: #{akfb_forward.2} parent=5 // pred_check_branch
      %237 = sbr.rel (%p235) target = $region20
    $region19: #{akfb_forward.2} parent=5 // pred_region
      // Predicated region
      $region21: #{akfb_forward.2} parent=19 // pred_check
        %p238 = pneg %p49
      $region22: #{akfb_forward.2} parent=19 // pred_check_branch
        %240 = sbr.rel (%p238) target = $region24
      $region23: #{akfb_forward.2} parent=19 // pred_region
        %s241 = smul.u32 %s20, 2
        %s242 = sadd.s32 %s241, %s21
        %p243 = scmp.lt.s32.totalorder %s242, 3
        %s244 = scalar_select %p243, %s242, 3
        %s245 = smul.addr %s244, 36
        %s246 = smul.addr %s245, 8
        %s247 = scalar_lea.vmem %s0, %s246
        %s248 = smul.u32 %s20, 2
        %s249 = sadd.s32 %s248, %s21
      $region24: #{akfb_forward.2} parent=19 // pred_fallthru
        _
      // Predicated region
      $region25: #{akfb_forward.2} parent=19 // pred_check
        %p250 = pneg %p75
      $region26: #{akfb_forward.2} parent=19 // pred_check_branch
        %252 = sbr.rel (%p250) target = $region28
      $region27: #{akfb_forward.2} parent=19 // pred_region
        %p253 = scmp.lt.s32.totalorder %s20, 1
        %s254 = scalar_select %p253, %s20, 1
        %s255 = smul.addr %s254, 2
        %s256 = smul.addr %s255, 8
        %s257 = scalar_lea.vmem %s1, %s256
      $region28: #{akfb_forward.2} parent=19 // pred_fallthru
        _
      // Predicated region
      $region29: #{akfb_forward.2} parent=19 // pred_check
        %p258 = pneg %p101
      $region30: #{akfb_forward.2} parent=19 // pred_check_branch
        %260 = sbr.rel (%p258) target = $region32
      $region31: #{akfb_forward.2} parent=19 // pred_region
        %p261 = scmp.lt.s32.totalorder %s20, 1
        %s262 = scalar_select %p261, %s20, 1
        %s263 = smul.addr %s262, 2
        %s264 = smul.addr %s263, 8
        %s265 = scalar_lea.vmem %s2, %s264
      $region32: #{akfb_forward.2} parent=19 // pred_fallthru
        _
    $region20: #{akfb_forward.2} parent=5 // pred_fallthru
      _
    %p266 = scmp.le.s32.totalorder 1, %s13
    %p267 = scmp.lt.s32.totalorder %s13, 5
    %p268 = pnand %p266, %p267
    %p269 = pneg %p268
    // Predicated region
    $region33: #{akfb_forward.2} parent=5 // pred_check
      _
    $region34: #{akfb_forward.2} parent=5 // pred_check_branch
      %271 = sbr.rel (%p268) target = $region36
    $region35: #{akfb_forward.2} parent=5 // pred_region
      %s272 = ssub.s32 %s13, 1
      %s273 = smul.u32 %s22, 2
      %s274 = sadd.s32 %s273, %s23
      %p275 = scmp.lt.s32.totalorder %s274, 3
      %s276 = scalar_select %p275, %s274, 3
      %s277 = smul.addr %s276, 36
      %s278 = smul.addr %s277, 8
      %s279 = scalar_lea.vmem %s0, %s278
      %p280 = pneg %p55
      %p281 = pneg %p52
      %p282 = scmp.lt.s32.totalorder %s22, 1
      %s283 = scalar_select %p282, %s22, 1
      %s284 = smul.addr %s283, 2
      %s285 = smul.addr %s284, 8
      %s286 = scalar_lea.vmem %s1, %s285
      %p287 = pneg %p81
      %p288 = pneg %p78
      %p289 = scmp.lt.s32.totalorder %s22, 1
      %s290 = scalar_select %p289, %s22, 1
      %s291 = smul.addr %s290, 2
      %s292 = smul.addr %s291, 8
      %s293 = scalar_lea.vmem %s2, %s292
      %p294 = pneg %p107
      %p295 = pneg %p104
      %p296 = pneg %p128
      %p297 = pneg %p125
      %p298 = pneg %p156
      %p299 = pneg %p153
      %s300 = smul.u32 8, %s23
      %p301 = scmp.lt.s32.totalorder %s22, 1
      %s302 = scalar_select %p301, %s22, 1
      %p303 = scmp.lt.s32.totalorder %s300, 15
      %s304 = scalar_select %p303, %s300, 15
      %s305 = smul.addr %s304, 2
      %s306 = smul.addr %s302, 32
      %s307 = sadd.s32 %s305, %s306
      %s308 = smul.addr %s307, 8
      %s309 = scalar_lea.vmem %s4, %s308
      %p310 = pneg %p186
      %p311 = pneg %p183
      %s312 = smul.u32 %s22, 2
      %s313 = sadd.s32 %s312, %s23
      %p314 = scmp.lt.s32.totalorder %s313, 3
      %s315 = scalar_select %p314, %s313, 3
      %s316 = scalar_lea.vmem %s5, %s315
      %p317 = pneg %p216
      %p318 = pneg %p213
      %s319 = smul.u32 %s22, 2
      %s320 = sadd.s32 %s319, %s23
      %p321 = scmp.lt.s32.totalorder %s320, 3
      %s322 = scalar_select %p321, %s320, 3
      %s323 = scalar_lea.vmem %s6, %s322
      %s324 = smul.u32 %s22, 2
      %s325 = sadd.s32 %s324, %s23
      %p326 = scmp.lt.s32.totalorder %s325, 3
      %s327 = scalar_select %p326, %s325, 3
      %s328 = smul.addr %s327, 36
      %s329 = smul.addr %s328, 8
      %s330 = scalar_lea.vmem %s0, %s329
      %s331 = smul.u32 %s22, 2
      %s332 = sadd.s32 %s331, %s23
      %p333 = scmp.lt.s32.totalorder %s22, 1
      %s334 = scalar_select %p333, %s22, 1
      %s335 = smul.addr %s334, 2
      %s336 = smul.addr %s335, 8
      %s337 = scalar_lea.vmem %s1, %s336
      %p338 = scmp.lt.s32.totalorder %s22, 1
      %s339 = scalar_select %p338, %s22, 1
      %s340 = smul.addr %s339, 2
      %s341 = smul.addr %s340, 8
      %s342 = scalar_lea.vmem %s2, %s341
      %s343 = smul.u32 8, %s23
      %p344 = scmp.lt.s32.totalorder %s22, 1
      %s345 = scalar_select %p344, %s22, 1
      %p346 = scmp.lt.s32.totalorder %s343, 15
      %s347 = scalar_select %p346, %s343, 15
      %s348 = smul.addr %s347, 2
      %s349 = smul.addr %s345, 32
      %s350 = sadd.s32 %s348, %s349
      %s351 = smul.addr %s350, 8
      %s352 = scalar_lea.vmem %s4, %s351
      %s353 = smul.u32 8, %s23
      %s354 = smul.u32 %s22, 2
      %s355 = sadd.s32 %s354, %s23
      %p356 = scmp.lt.s32.totalorder %s355, 3
      %s357 = scalar_select %p356, %s355, 3
      %s358 = scalar_lea.vmem %s5, %s357
      %s359 = smul.u32 %s22, 2
      %s360 = sadd.s32 %s359, %s23
      %s361 = smul.u32 %s22, 2
      %s362 = sadd.s32 %s361, %s23
      %p363 = scmp.lt.s32.totalorder %s362, 3
      %s364 = scalar_select %p363, %s362, 3
      %s365 = scalar_lea.vmem %s6, %s364
      %s366 = smul.u32 %s22, 2
      %s367 = sadd.s32 %s366, %s23
      %v368 = vld [vmem:[%s330] sm:$0xff]
      %v369 = vld [vmem:[%s330 + $0x8] sm:$0xff]
      %v370 = vld [vmem:[%s330 + $0x10] sm:$0xf]
      %v371 = vld [vmem:[%s330 + $0x18] sm:$0xff]
      %v372 = vld [vmem:[%s330 + $0x20] sm:$0xff]
      %v373 = vld [vmem:[%s330 + $0x28] sm:$0xf]
      %v374 = vld [vmem:[%s330 + $0x30] sm:$0xff]
      %v375 = vld [vmem:[%s330 + $0x38] sm:$0xff]
      %v376 = vld [vmem:[%s330 + $0x40] sm:$0xf]
      %v377 = vld [vmem:[%s330 + $0x48] sm:$0xff]
      %v378 = vld [vmem:[%s330 + $0x50] sm:$0xff]
      %v379 = vld [vmem:[%s330 + $0x58] sm:$0xf]
      %v380 = vld [vmem:[%s330 + $0x60] sm:$0xff]
      %v381 = vld [vmem:[%s330 + $0x68] sm:$0xff]
      %v382 = vld [vmem:[%s330 + $0x70] sm:$0xf]
      %v383 = vld [vmem:[%s330 + $0x78] sm:$0xff]
      %v384 = vld [vmem:[%s330 + $0x80] sm:$0xff]
      %v385 = vld [vmem:[%s330 + $0x88] sm:$0xf]
      %v386 = vld [vmem:[%s330 + $0x90] sm:$0xff]
      %v387 = vld [vmem:[%s330 + $0x98] sm:$0xff]
      %v388 = vld [vmem:[%s330 + $0xa0] sm:$0xf]
      %v389 = vld [vmem:[%s330 + $0xa8] sm:$0xff]
      %v390 = vld [vmem:[%s330 + $0xb0] sm:$0xff]
      %v391 = vld [vmem:[%s330 + $0xb8] sm:$0xf]
      %v392 = vld [vmem:[%s330 + $0xc0] sm:$0xff]
      %v393 = vld [vmem:[%s330 + $0xc8] sm:$0xff]
      %v394 = vld [vmem:[%s330 + $0xd0] sm:$0xf]
      %v395 = vld [vmem:[%s330 + $0xd8] sm:$0xff]
      %v396 = vld [vmem:[%s330 + $0xe0] sm:$0xff]
      %v397 = vld [vmem:[%s330 + $0xe8] sm:$0xf]
      %v398 = vld [vmem:[%s330 + $0xf0] sm:$0xff]
      %v399 = vld [vmem:[%s330 + $0xf8] sm:$0xff]
      %v400 = vld [vmem:[%s330 + $0x100] sm:$0xf]
      %v401 = vld [vmem:[%s330 + $0x108] sm:$0xff]
      %v402 = vld [vmem:[%s330 + $0x110] sm:$0xff]
      %v403 = vld [vmem:[%s330 + $0x118] sm:$0xf]
      %v404 = vld [vmem:[%s337] sm:$0xff]
      %v405 = vld [vmem:[%s337 + $0x8] sm:$0x1]
      %v406 = vld [vmem:[%s342] sm:$0xff]
      %v407 = vld [vmem:[%s342 + $0x8] sm:$0x1]
      %v408 = vlaneseq
      %v409 = vshrl.u32 %v408, 7
      %v410 = vsub.s32 0, %v409
      %v411 = vrot.slane %v404, %v410
      %v412 = vmul.f32 %v411, %v371
      %v413 = vmul.f32 %v411, %v372
      %v414 = vmul.f32 %v411, %v373
      %v415 = vmul.f32 %v411, %v374
      %v416 = vmul.f32 %v411, %v375
      %v417 = vmul.f32 %v411, %v376
      %v418 = vmul.f32 %v411, %v377
      %v419 = vmul.f32 %v411, %v378
      %v420 = vmul.f32 %v411, %v379
      %v421 = vmul.f32 %v411, %v380
      %v422 = vmul.f32 %v411, %v381
      %v423 = vmul.f32 %v411, %v382
      %v424 = vmul.f32 %v411, %v383
      %v425 = vmul.f32 %v411, %v384
      %v426 = vmul.f32 %v411, %v385
      %v427 = vmul.f32 %v411, %v386
      %v428 = vmul.f32 %v411, %v387
      %v429 = vmul.f32 %v411, %v388
      %v430 = vmul.f32 %v411, %v389
      %v431 = vmul.f32 %v411, %v390
      %v432 = vmul.f32 %v411, %v391
      %v433 = vmul.f32 %v411, %v392
      %v434 = vmul.f32 %v411, %v393
      %v435 = vmul.f32 %v411, %v394
      %v436 = vadd.f32 %v412, 0.0
      %v437 = vadd.f32 %v413, 0.0
      %v438 = vadd.f32 %v414, 0.0
      %v439 = vadd.f32 %v415, 0.0
      %v440 = vadd.f32 %v416, 0.0
      %v441 = vadd.f32 %v417, 0.0
      %v442 = vadd.f32 %v418, 0.0
      %v443 = vadd.f32 %v419, 0.0
      %v444 = vadd.f32 %v420, 0.0
      %v445 = vadd.f32 %v421, 0.0
      %v446 = vadd.f32 %v422, 0.0
      %v447 = vadd.f32 %v423, 0.0
      %v448 = vadd.f32 %v424, 0.0
      %v449 = vadd.f32 %v425, 0.0
      %v450 = vadd.f32 %v426, 0.0
      %v451 = vadd.f32 %v427, 0.0
      %v452 = vadd.f32 %v428, 0.0
      %v453 = vadd.f32 %v429, 0.0
      %v454 = vadd.f32 %v430, 0.0
      %v455 = vadd.f32 %v431, 0.0
      %v456 = vadd.f32 %v432, 0.0
      %v457 = vadd.f32 %v433, 0.0
      %v458 = vadd.f32 %v434, 0.0
      %v459 = vadd.f32 %v435, 0.0
      %v460 = vlaneseq
      %v461 = vshrl.u32 %v460, 7
      %v462 = vsub.s32 0, %v461
      %v463 = vrot.slane %v406, %v462
      %v464 = vmul.f32 %v463, %v368
      %v465 = vmul.f32 %v463, %v369
      %v466 = vmul.f32 %v463, %v371
      %v467 = vmul.f32 %v463, %v372
      %v468 = vmul.f32 %v463, %v374
      %v469 = vmul.f32 %v463, %v375
      %v470 = vmul.f32 %v463, %v377
      %v471 = vmul.f32 %v463, %v378
      %v472 = vmul.f32 %v463, %v380
      %v473 = vmul.f32 %v463, %v381
      %v474 = vmul.f32 %v463, %v383
      %v475 = vmul.f32 %v463, %v384
      %v476 = vmul.f32 %v463, %v386
      %v477 = vmul.f32 %v463, %v387
      %v478 = vmul.f32 %v463, %v389
      %v479 = vmul.f32 %v463, %v390
      %vm496 = vcmask 1040384
      %v497 = vrot.slane %v464, 7
      %v498 = vrot.slane %v465, 7
      %v499 = vsel %vm496, %v497, %v498
      %v500 = vrot.slane %v466, 7
      %v501 = vrot.slane %v467, 7
      %v502 = vsel %vm496, %v500, %v501
      %v503 = vrot.slane %v468, 7
      %v504 = vrot.slane %v469, 7
      %v505 = vsel %vm496, %v503, %v504
      %v506 = vrot.slane %v470, 7
      %v507 = vrot.slane %v471, 7
      %v508 = vsel %vm496, %v506, %v507
      %v509 = vrot.slane %v472, 7
      %v510 = vrot.slane %v473, 7
      %v511 = vsel %vm496, %v509, %v510
      %v512 = vrot.slane %v474, 7
      %v513 = vrot.slane %v475, 7
      %v514 = vsel %vm496, %v512, %v513
      %v515 = vrot.slane %v476, 7
      %v516 = vrot.slane %v477, 7
      %v517 = vsel %vm496, %v515, %v516
      %v518 = vrot.slane %v478, 7
      %v519 = vrot.slane %v479, 7
      %v520 = vsel %vm496, %v518, %v519
      %v545 = vadd.f32 %v436, %v497
      %v546 = vadd.f32 %v437, %v499
      %v547 = vadd.f32 %v438, %v498
      %v548 = vadd.f32 %v439, %v500
      %v549 = vadd.f32 %v440, %v502
      %v550 = vadd.f32 %v441, %v501
      %v551 = vadd.f32 %v442, %v503
      %v552 = vadd.f32 %v443, %v505
      %v553 = vadd.f32 %v444, %v504
      %v554 = vadd.f32 %v445, %v506
      %v555 = vadd.f32 %v446, %v508
      %v556 = vadd.f32 %v447, %v507
      %v557 = vadd.f32 %v448, %v509
      %v558 = vadd.f32 %v449, %v511
      %v559 = vadd.f32 %v450, %v510
      %v560 = vadd.f32 %v451, %v512
      %v561 = vadd.f32 %v452, %v514
      %v562 = vadd.f32 %v453, %v513
      %v563 = vadd.f32 %v454, %v515
      %v564 = vadd.f32 %v455, %v517
      %v565 = vadd.f32 %v456, %v516
      %v566 = vadd.f32 %v457, %v518
      %v567 = vadd.f32 %v458, %v520
      %v568 = vadd.f32 %v459, %v519
      %v569 = vlaneseq
      %v570 = vshrl.u32 %v569, 7
      %v571 = vsub.s32 1, %v570
      %v572 = vrot.slane %v404, %v571
      %v573 = vmul.f32 %v572, %v371
      %v574 = vmul.f32 %v572, %v372
      %v575 = vmul.f32 %v572, %v373
      %v576 = vmul.f32 %v572, %v374
      %v577 = vmul.f32 %v572, %v375
      %v578 = vmul.f32 %v572, %v376
      %v579 = vmul.f32 %v572, %v377
      %v580 = vmul.f32 %v572, %v378
      %v581 = vmul.f32 %v572, %v379
      %v582 = vmul.f32 %v572, %v380
      %v583 = vmul.f32 %v572, %v381
      %v584 = vmul.f32 %v572, %v382
      %v585 = vmul.f32 %v572, %v383
      %v586 = vmul.f32 %v572, %v384
      %v587 = vmul.f32 %v572, %v385
      %v588 = vmul.f32 %v572, %v386
      %v589 = vmul.f32 %v572, %v387
      %v590 = vmul.f32 %v572, %v388
      %v591 = vmul.f32 %v572, %v389
      %v592 = vmul.f32 %v572, %v390
      %v593 = vmul.f32 %v572, %v391
      %v594 = vmul.f32 %v572, %v392
      %v595 = vmul.f32 %v572, %v393
      %v596 = vmul.f32 %v572, %v394
      %vm621 = vcmask 1046528
      %v622 = vrot.slane %v573, 1
      %v623 = vrot.slane %v574, 1
      %v624 = vsel %vm621, %v622, %v623
      %v625 = vrot.slane %v575, 1
      %v626 = vsel %vm621, %v623, %v625
      %v627 = vrot.slane %v576, 1
      %v628 = vrot.slane %v577, 1
      %v629 = vsel %vm621, %v627, %v628
      %v630 = vrot.slane %v578, 1
      %v631 = vsel %vm621, %v628, %v630
      %v632 = vrot.slane %v579, 1
      %v633 = vrot.slane %v580, 1
      %v634 = vsel %vm621, %v632, %v633
      %v635 = vrot.slane %v581, 1
      %v636 = vsel %vm621, %v633, %v635
      %v637 = vrot.slane %v582, 1
      %v638 = vrot.slane %v583, 1
      %v639 = vsel %vm621, %v637, %v638
      %v640 = vrot.slane %v584, 1
      %v641 = vsel %vm621, %v638, %v640
      %v642 = vrot.slane %v585, 1
      %v643 = vrot.slane %v586, 1
      %v644 = vsel %vm621, %v642, %v643
      %v645 = vrot.slane %v587, 1
      %v646 = vsel %vm621, %v643, %v645
      %v647 = vrot.slane %v588, 1
      %v648 = vrot.slane %v589, 1
      %v649 = vsel %vm621, %v647, %v648
      %v650 = vrot.slane %v590, 1
      %v651 = vsel %vm621, %v648, %v650
      %v652 = vrot.slane %v591, 1
      %v653 = vrot.slane %v592, 1
      %v654 = vsel %vm621, %v652, %v653
      %v655 = vrot.slane %v593, 1
      %v656 = vsel %vm621, %v653, %v655
      %v657 = vrot.slane %v594, 1
      %v658 = vrot.slane %v595, 1
      %v659 = vsel %vm621, %v657, %v658
      %v660 = vrot.slane %v596, 1
      %v661 = vsel %vm621, %v658, %v660
      %v686 = vadd.f32 %v545, %v624
      %v687 = vadd.f32 %v546, %v626
      %v688 = vadd.f32 %v547, %v625
      %v689 = vadd.f32 %v548, %v629
      %v690 = vadd.f32 %v549, %v631
      %v691 = vadd.f32 %v550, %v630
      %v692 = vadd.f32 %v551, %v634
      %v693 = vadd.f32 %v552, %v636
      %v694 = vadd.f32 %v553, %v635
      %v695 = vadd.f32 %v554, %v639
      %v696 = vadd.f32 %v555, %v641
      %v697 = vadd.f32 %v556, %v640
      %v698 = vadd.f32 %v557, %v644
      %v699 = vadd.f32 %v558, %v646
      %v700 = vadd.f32 %v559, %v645
      %v701 = vadd.f32 %v560, %v649
      %v702 = vadd.f32 %v561, %v651
      %v703 = vadd.f32 %v562, %v650
      %v704 = vadd.f32 %v563, %v654
      %v705 = vadd.f32 %v564, %v656
      %v706 = vadd.f32 %v565, %v655
      %v707 = vadd.f32 %v566, %v659
      %v708 = vadd.f32 %v567, %v661
      %v709 = vadd.f32 %v568, %v660
      %v710 = vlaneseq
      %v711 = vshrl.u32 %v710, 7
      %v712 = vsub.s32 1, %v711
      %v713 = vrot.slane %v406, %v712
      %v714 = vmul.f32 %v713, %v368
      %v715 = vmul.f32 %v713, %v369
      %v716 = vmul.f32 %v713, %v370
      %v717 = vmul.f32 %v713, %v371
      %v718 = vmul.f32 %v713, %v372
      %v719 = vmul.f32 %v713, %v373
      %v720 = vmul.f32 %v713, %v374
      %v721 = vmul.f32 %v713, %v375
      %v722 = vmul.f32 %v713, %v376
      %v723 = vmul.f32 %v713, %v377
      %v724 = vmul.f32 %v713, %v378
      %v725 = vmul.f32 %v713, %v379
      %v726 = vmul.f32 %v713, %v380
      %v727 = vmul.f32 %v713, %v381
      %v728 = vmul.f32 %v713, %v382
      %v729 = vmul.f32 %v713, %v383
      %v730 = vmul.f32 %v713, %v384
      %v731 = vmul.f32 %v713, %v385
      %v732 = vmul.f32 %v713, %v386
      %v733 = vmul.f32 %v713, %v387
      %v734 = vmul.f32 %v713, %v388
      %v735 = vmul.f32 %v713, %v389
      %v736 = vmul.f32 %v713, %v390
      %v737 = vmul.f32 %v713, %v391
      %v762 = vrot.slane %v714, 1
      %v763 = vrot.slane %v715, 1
      %v764 = vsel %vm621, %v762, %v763
      %v765 = vrot.slane %v716, 1
      %v766 = vsel %vm621, %v763, %v765
      %v767 = vrot.slane %v717, 1
      %v768 = vrot.slane %v718, 1
      %v769 = vsel %vm621, %v767, %v768
      %v770 = vrot.slane %v719, 1
      %v771 = vsel %vm621, %v768, %v770
      %v772 = vrot.slane %v720, 1
      %v773 = vrot.slane %v721, 1
      %v774 = vsel %vm621, %v772, %v773
      %v775 = vrot.slane %v722, 1
      %v776 = vsel %vm621, %v773, %v775
      %v777 = vrot.slane %v723, 1
      %v778 = vrot.slane %v724, 1
      %v779 = vsel %vm621, %v777, %v778
      %v780 = vrot.slane %v725, 1
      %v781 = vsel %vm621, %v778, %v780
      %v782 = vrot.slane %v726, 1
      %v783 = vrot.slane %v727, 1
      %v784 = vsel %vm621, %v782, %v783
      %v785 = vrot.slane %v728, 1
      %v786 = vsel %vm621, %v783, %v785
      %v787 = vrot.slane %v729, 1
      %v788 = vrot.slane %v730, 1
      %v789 = vsel %vm621, %v787, %v788
      %v790 = vrot.slane %v731, 1
      %v791 = vsel %vm621, %v788, %v790
      %v792 = vrot.slane %v732, 1
      %v793 = vrot.slane %v733, 1
      %v794 = vsel %vm621, %v792, %v793
      %v795 = vrot.slane %v734, 1
      %v796 = vsel %vm621, %v793, %v795
      %v797 = vrot.slane %v735, 1
      %v798 = vrot.slane %v736, 1
      %v799 = vsel %vm621, %v797, %v798
      %v800 = vrot.slane %v737, 1
      %v801 = vsel %vm621, %v798, %v800
      %v826 = vadd.f32 %v686, %v764
      %v827 = vadd.f32 %v687, %v766
      %v828 = vadd.f32 %v688, %v765
      %v829 = vadd.f32 %v689, %v769
      %v830 = vadd.f32 %v690, %v771
      %v831 = vadd.f32 %v691, %v770
      %v832 = vadd.f32 %v692, %v774
      %v833 = vadd.f32 %v693, %v776
      %v834 = vadd.f32 %v694, %v775
      %v835 = vadd.f32 %v695, %v779
      %v836 = vadd.f32 %v696, %v781
      %v837 = vadd.f32 %v697, %v780
      %v838 = vadd.f32 %v698, %v784
      %v839 = vadd.f32 %v699, %v786
      %v840 = vadd.f32 %v700, %v785
      %v841 = vadd.f32 %v701, %v789
      %v842 = vadd.f32 %v702, %v791
      %v843 = vadd.f32 %v703, %v790
      %v844 = vadd.f32 %v704, %v794
      %v845 = vadd.f32 %v705, %v796
      %v846 = vadd.f32 %v706, %v795
      %v847 = vadd.f32 %v707, %v799
      %v848 = vadd.f32 %v708, %v801
      %v849 = vadd.f32 %v709, %v800
      %v850 = vlaneseq
      %v851 = vshrl.u32 %v850, 7
      %v852 = vsub.s32 2, %v851
      %v853 = vrot.slane %v404, %v852
      %v854 = vmul.f32 %v853, %v371
      %v855 = vmul.f32 %v853, %v372
      %v856 = vmul.f32 %v853, %v373
      %v857 = vmul.f32 %v853, %v374
      %v858 = vmul.f32 %v853, %v375
      %v859 = vmul.f32 %v853, %v376
      %v860 = vmul.f32 %v853, %v377
      %v861 = vmul.f32 %v853, %v378
      %v862 = vmul.f32 %v853, %v379
      %v863 = vmul.f32 %v853, %v380
      %v864 = vmul.f32 %v853, %v381
      %v865 = vmul.f32 %v853, %v382
      %v866 = vmul.f32 %v853, %v383
      %v867 = vmul.f32 %v853, %v384
      %v868 = vmul.f32 %v853, %v385
      %v869 = vmul.f32 %v853, %v386
      %v870 = vmul.f32 %v853, %v387
      %v871 = vmul.f32 %v853, %v388
      %v872 = vmul.f32 %v853, %v389
      %v873 = vmul.f32 %v853, %v390
      %v874 = vmul.f32 %v853, %v391
      %v875 = vmul.f32 %v853, %v392
      %v876 = vmul.f32 %v853, %v393
      %v877 = vmul.f32 %v853, %v394
      %vm902 = vcmask 1045504
      %v903 = vrot.slane %v854, 2
      %v904 = vrot.slane %v855, 2
      %v905 = vsel %vm902, %v903, %v904
      %v906 = vrot.slane %v856, 2
      %v907 = vsel %vm902, %v904, %v906
      %v908 = vrot.slane %v857, 2
      %v909 = vrot.slane %v858, 2
      %v910 = vsel %vm902, %v908, %v909
      %v911 = vrot.slane %v859, 2
      %v912 = vsel %vm902, %v909, %v911
      %v913 = vrot.slane %v860, 2
      %v914 = vrot.slane %v861, 2
      %v915 = vsel %vm902, %v913, %v914
      %v916 = vrot.slane %v862, 2
      %v917 = vsel %vm902, %v914, %v916
      %v918 = vrot.slane %v863, 2
      %v919 = vrot.slane %v864, 2
      %v920 = vsel %vm902, %v918, %v919
      %v921 = vrot.slane %v865, 2
      %v922 = vsel %vm902, %v919, %v921
      %v923 = vrot.slane %v866, 2
      %v924 = vrot.slane %v867, 2
      %v925 = vsel %vm902, %v923, %v924
      %v926 = vrot.slane %v868, 2
      %v927 = vsel %vm902, %v924, %v926
      %v928 = vrot.slane %v869, 2
      %v929 = vrot.slane %v870, 2
      %v930 = vsel %vm902, %v928, %v929
      %v931 = vrot.slane %v871, 2
      %v932 = vsel %vm902, %v929, %v931
      %v933 = vrot.slane %v872, 2
      %v934 = vrot.slane %v873, 2
      %v935 = vsel %vm902, %v933, %v934
      %v936 = vrot.slane %v874, 2
      %v937 = vsel %vm902, %v934, %v936
      %v938 = vrot.slane %v875, 2
      %v939 = vrot.slane %v876, 2
      %v940 = vsel %vm902, %v938, %v939
      %v941 = vrot.slane %v877, 2
      %v942 = vsel %vm902, %v939, %v941
      %v967 = vadd.f32 %v826, %v905
      %v968 = vadd.f32 %v827, %v907
      %v969 = vadd.f32 %v828, %v906
      %v970 = vadd.f32 %v829, %v910
      %v971 = vadd.f32 %v830, %v912
      %v972 = vadd.f32 %v831, %v911
      %v973 = vadd.f32 %v832, %v915
      %v974 = vadd.f32 %v833, %v917
      %v975 = vadd.f32 %v834, %v916
      %v976 = vadd.f32 %v835, %v920
      %v977 = vadd.f32 %v836, %v922
      %v978 = vadd.f32 %v837, %v921
      %v979 = vadd.f32 %v838, %v925
      %v980 = vadd.f32 %v839, %v927
      %v981 = vadd.f32 %v840, %v926
      %v982 = vadd.f32 %v841, %v930
      %v983 = vadd.f32 %v842, %v932
      %v984 = vadd.f32 %v843, %v931
      %v985 = vadd.f32 %v844, %v935
      %v986 = vadd.f32 %v845, %v937
      %v987 = vadd.f32 %v846, %v936
      %v988 = vadd.f32 %v847, %v940
      %v989 = vadd.f32 %v848, %v942
      %v990 = vadd.f32 %v849, %v941
      %v991 = vlaneseq
      %v992 = vshrl.u32 %v991, 7
      %v993 = vsub.s32 2, %v992
      %v994 = vrot.slane %v406, %v993
      %v995 = vmul.f32 %v994, %v368
      %v996 = vmul.f32 %v994, %v369
      %v997 = vmul.f32 %v994, %v370
      %v998 = vmul.f32 %v994, %v371
      %v999 = vmul.f32 %v994, %v372
      %v1000 = vmul.f32 %v994, %v373
      %v1001 = vmul.f32 %v994, %v374
      %v1002 = vmul.f32 %v994, %v375
      %v1003 = vmul.f32 %v994, %v376
      %v1004 = vmul.f32 %v994, %v377
      %v1005 = vmul.f32 %v994, %v378
      %v1006 = vmul.f32 %v994, %v379
      %v1007 = vmul.f32 %v994, %v380
      %v1008 = vmul.f32 %v994, %v381
      %v1009 = vmul.f32 %v994, %v382
      %v1010 = vmul.f32 %v994, %v383
      %v1011 = vmul.f32 %v994, %v384
      %v1012 = vmul.f32 %v994, %v385
      %v1013 = vmul.f32 %v994, %v386
      %v1014 = vmul.f32 %v994, %v387
      %v1015 = vmul.f32 %v994, %v388
      %v1016 = vmul.f32 %v994, %v389
      %v1017 = vmul.f32 %v994, %v390
      %v1018 = vmul.f32 %v994, %v391
      %vm1043 = vcmask 1044480
      %v1044 = vrot.slane %v995, 3
      %v1045 = vrot.slane %v996, 3
      %v1046 = vsel %vm1043, %v1044, %v1045
      %v1047 = vrot.slane %v997, 3
      %v1048 = vsel %vm1043, %v1045, %v1047
      %v1049 = vrot.slane %v998, 3
      %v1050 = vrot.slane %v999, 3
      %v1051 = vsel %vm1043, %v1049, %v1050
      %v1052 = vrot.slane %v1000, 3
      %v1053 = vsel %vm1043, %v1050, %v1052
      %v1054 = vrot.slane %v1001, 3
      %v1055 = vrot.slane %v1002, 3
      %v1056 = vsel %vm1043, %v1054, %v1055
      %v1057 = vrot.slane %v1003, 3
      %v1058 = vsel %vm1043, %v1055, %v1057
      %v1059 = vrot.slane %v1004, 3
      %v1060 = vrot.slane %v1005, 3
      %v1061 = vsel %vm1043, %v1059, %v1060
      %v1062 = vrot.slane %v1006, 3
      %v1063 = vsel %vm1043, %v1060, %v1062
      %v1064 = vrot.slane %v1007, 3
      %v1065 = vrot.slane %v1008, 3
      %v1066 = vsel %vm1043, %v1064, %v1065
      %v1067 = vrot.slane %v1009, 3
      %v1068 = vsel %vm1043, %v1065, %v1067
      %v1069 = vrot.slane %v1010, 3
      %v1070 = vrot.slane %v1011, 3
      %v1071 = vsel %vm1043, %v1069, %v1070
      %v1072 = vrot.slane %v1012, 3
      %v1073 = vsel %vm1043, %v1070, %v1072
      %v1074 = vrot.slane %v1013, 3
      %v1075 = vrot.slane %v1014, 3
      %v1076 = vsel %vm1043, %v1074, %v1075
      %v1077 = vrot.slane %v1015, 3
      %v1078 = vsel %vm1043, %v1075, %v1077
      %v1079 = vrot.slane %v1016, 3
      %v1080 = vrot.slane %v1017, 3
      %v1081 = vsel %vm1043, %v1079, %v1080
      %v1082 = vrot.slane %v1018, 3
      %v1083 = vsel %vm1043, %v1080, %v1082
      %v1108 = vadd.f32 %v967, %v1046
      %v1109 = vadd.f32 %v968, %v1048
      %v1110 = vadd.f32 %v969, %v1047
      %v1111 = vadd.f32 %v970, %v1051
      %v1112 = vadd.f32 %v971, %v1053
      %v1113 = vadd.f32 %v972, %v1052
      %v1114 = vadd.f32 %v973, %v1056
      %v1115 = vadd.f32 %v974, %v1058
      %v1116 = vadd.f32 %v975, %v1057
      %v1117 = vadd.f32 %v976, %v1061
      %v1118 = vadd.f32 %v977, %v1063
      %v1119 = vadd.f32 %v978, %v1062
      %v1120 = vadd.f32 %v979, %v1066
      %v1121 = vadd.f32 %v980, %v1068
      %v1122 = vadd.f32 %v981, %v1067
      %v1123 = vadd.f32 %v982, %v1071
      %v1124 = vadd.f32 %v983, %v1073
      %v1125 = vadd.f32 %v984, %v1072
      %v1126 = vadd.f32 %v985, %v1076
      %v1127 = vadd.f32 %v986, %v1078
      %v1128 = vadd.f32 %v987, %v1077
      %v1129 = vadd.f32 %v988, %v1081
      %v1130 = vadd.f32 %v989, %v1083
      %v1131 = vadd.f32 %v990, %v1082
      %v1132 = vlaneseq
      %v1133 = vshrl.u32 %v1132, 7
      %v1134 = vsub.s32 3, %v1133
      %v1135 = vrot.slane %v404, %v1134
      %v1136 = vmul.f32 %v1135, %v374
      %v1137 = vmul.f32 %v1135, %v375
      %v1138 = vmul.f32 %v1135, %v376
      %v1139 = vmul.f32 %v1135, %v377
      %v1140 = vmul.f32 %v1135, %v378
      %v1141 = vmul.f32 %v1135, %v379
      %v1142 = vmul.f32 %v1135, %v380
      %v1143 = vmul.f32 %v1135, %v381
      %v1144 = vmul.f32 %v1135, %v382
      %v1145 = vmul.f32 %v1135, %v383
      %v1146 = vmul.f32 %v1135, %v384
      %v1147 = vmul.f32 %v1135, %v385
      %v1148 = vmul.f32 %v1135, %v386
      %v1149 = vmul.f32 %v1135, %v387
      %v1150 = vmul.f32 %v1135, %v388
      %v1151 = vmul.f32 %v1135, %v389
      %v1152 = vmul.f32 %v1135, %v390
      %v1153 = vmul.f32 %v1135, %v391
      %v1154 = vmul.f32 %v1135, %v392
      %v1155 = vmul.f32 %v1135, %v393
      %v1156 = vmul.f32 %v1135, %v394
      %v1157 = vmul.f32 %v1135, %v395
      %v1158 = vmul.f32 %v1135, %v396
      %v1159 = vmul.f32 %v1135, %v397
      %v1160 = vadd.f32 %v1108, %v1136
      %v1161 = vadd.f32 %v1109, %v1137
      %v1162 = vadd.f32 %v1110, %v1138
      %v1163 = vadd.f32 %v1111, %v1139
      %v1164 = vadd.f32 %v1112, %v1140
      %v1165 = vadd.f32 %v1113, %v1141
      %v1166 = vadd.f32 %v1114, %v1142
      %v1167 = vadd.f32 %v1115, %v1143
      %v1168 = vadd.f32 %v1116, %v1144
      %v1169 = vadd.f32 %v1117, %v1145
      %v1170 = vadd.f32 %v1118, %v1146
      %v1171 = vadd.f32 %v1119, %v1147
      %v1172 = vadd.f32 %v1120, %v1148
      %v1173 = vadd.f32 %v1121, %v1149
      %v1174 = vadd.f32 %v1122, %v1150
      %v1175 = vadd.f32 %v1123, %v1151
      %v1176 = vadd.f32 %v1124, %v1152
      %v1177 = vadd.f32 %v1125, %v1153
      %v1178 = vadd.f32 %v1126, %v1154
      %v1179 = vadd.f32 %v1127, %v1155
      %v1180 = vadd.f32 %v1128, %v1156
      %v1181 = vadd.f32 %v1129, %v1157
      %v1182 = vadd.f32 %v1130, %v1158
      %v1183 = vadd.f32 %v1131, %v1159
      %v1184 = vlaneseq
      %v1185 = vshrl.u32 %v1184, 7
      %v1186 = vsub.s32 3, %v1185
      %v1187 = vrot.slane %v406, %v1186
      %v1188 = vmul.f32 %v1187, %v374
      %v1189 = vmul.f32 %v1187, %v375
      %v1190 = vmul.f32 %v1187, %v377
      %v1191 = vmul.f32 %v1187, %v378
      %v1192 = vmul.f32 %v1187, %v380
      %v1193 = vmul.f32 %v1187, %v381
      %v1194 = vmul.f32 %v1187, %v383
      %v1195 = vmul.f32 %v1187, %v384
      %v1196 = vmul.f32 %v1187, %v386
      %v1197 = vmul.f32 %v1187, %v387
      %v1198 = vmul.f32 %v1187, %v389
      %v1199 = vmul.f32 %v1187, %v390
      %v1200 = vmul.f32 %v1187, %v392
      %v1201 = vmul.f32 %v1187, %v393
      %v1202 = vmul.f32 %v1187, %v395
      %v1203 = vmul.f32 %v1187, %v396
      %v1220 = vrot.slane %v1188, 7
      %v1221 = vrot.slane %v1189, 7
      %v1222 = vsel %vm496, %v1220, %v1221
      %v1223 = vrot.slane %v1190, 7
      %v1224 = vrot.slane %v1191, 7
      %v1225 = vsel %vm496, %v1223, %v1224
      %v1226 = vrot.slane %v1192, 7
      %v1227 = vrot.slane %v1193, 7
      %v1228 = vsel %vm496, %v1226, %v1227
      %v1229 = vrot.slane %v1194, 7
      %v1230 = vrot.slane %v1195, 7
      %v1231 = vsel %vm496, %v1229, %v1230
      %v1232 = vrot.slane %v1196, 7
      %v1233 = vrot.slane %v1197, 7
      %v1234 = vsel %vm496, %v1232, %v1233
      %v1235 = vrot.slane %v1198, 7
      %v1236 = vrot.slane %v1199, 7
      %v1237 = vsel %vm496, %v1235, %v1236
      %v1238 = vrot.slane %v1200, 7
      %v1239 = vrot.slane %v1201, 7
      %v1240 = vsel %vm496, %v1238, %v1239
      %v1241 = vrot.slane %v1202, 7
      %v1242 = vrot.slane %v1203, 7
      %v1243 = vsel %vm496, %v1241, %v1242
      %v1268 = vadd.f32 %v1160, %v1220
      %v1269 = vadd.f32 %v1161, %v1222
      %v1270 = vadd.f32 %v1162, %v1221
      %v1271 = vadd.f32 %v1163, %v1223
      %v1272 = vadd.f32 %v1164, %v1225
      %v1273 = vadd.f32 %v1165, %v1224
      %v1274 = vadd.f32 %v1166, %v1226
      %v1275 = vadd.f32 %v1167, %v1228
      %v1276 = vadd.f32 %v1168, %v1227
      %v1277 = vadd.f32 %v1169, %v1229
      %v1278 = vadd.f32 %v1170, %v1231
      %v1279 = vadd.f32 %v1171, %v1230
      %v1280 = vadd.f32 %v1172, %v1232
      %v1281 = vadd.f32 %v1173, %v1234
      %v1282 = vadd.f32 %v1174, %v1233
      %v1283 = vadd.f32 %v1175, %v1235
      %v1284 = vadd.f32 %v1176, %v1237
      %v1285 = vadd.f32 %v1177, %v1236
      %v1286 = vadd.f32 %v1178, %v1238
      %v1287 = vadd.f32 %v1179, %v1240
      %v1288 = vadd.f32 %v1180, %v1239
      %v1289 = vadd.f32 %v1181, %v1241
      %v1290 = vadd.f32 %v1182, %v1243
      %v1291 = vadd.f32 %v1183, %v1242
      %v1292 = vlaneseq
      %v1293 = vshrl.u32 %v1292, 7
      %v1294 = vsub.s32 4, %v1293
      %v1295 = vrot.slane %v404, %v1294
      %v1296 = vmul.f32 %v1295, %v374
      %v1297 = vmul.f32 %v1295, %v375
      %v1298 = vmul.f32 %v1295, %v376
      %v1299 = vmul.f32 %v1295, %v377
      %v1300 = vmul.f32 %v1295, %v378
      %v1301 = vmul.f32 %v1295, %v379
      %v1302 = vmul.f32 %v1295, %v380
      %v1303 = vmul.f32 %v1295, %v381
      %v1304 = vmul.f32 %v1295, %v382
      %v1305 = vmul.f32 %v1295, %v383
      %v1306 = vmul.f32 %v1295, %v384
      %v1307 = vmul.f32 %v1295, %v385
      %v1308 = vmul.f32 %v1295, %v386
      %v1309 = vmul.f32 %v1295, %v387
      %v1310 = vmul.f32 %v1295, %v388
      %v1311 = vmul.f32 %v1295, %v389
      %v1312 = vmul.f32 %v1295, %v390
      %v1313 = vmul.f32 %v1295, %v391
      %v1314 = vmul.f32 %v1295, %v392
      %v1315 = vmul.f32 %v1295, %v393
      %v1316 = vmul.f32 %v1295, %v394
      %v1317 = vmul.f32 %v1295, %v395
      %v1318 = vmul.f32 %v1295, %v396
      %v1319 = vmul.f32 %v1295, %v397
      %v1344 = vrot.slane %v1296, 1
      %v1345 = vrot.slane %v1297, 1
      %v1346 = vsel %vm621, %v1344, %v1345
      %v1347 = vrot.slane %v1298, 1
      %v1348 = vsel %vm621, %v1345, %v1347
      %v1349 = vrot.slane %v1299, 1
      %v1350 = vrot.slane %v1300, 1
      %v1351 = vsel %vm621, %v1349, %v1350
      %v1352 = vrot.slane %v1301, 1
      %v1353 = vsel %vm621, %v1350, %v1352
      %v1354 = vrot.slane %v1302, 1
      %v1355 = vrot.slane %v1303, 1
      %v1356 = vsel %vm621, %v1354, %v1355
      %v1357 = vrot.slane %v1304, 1
      %v1358 = vsel %vm621, %v1355, %v1357
      %v1359 = vrot.slane %v1305, 1
      %v1360 = vrot.slane %v1306, 1
      %v1361 = vsel %vm621, %v1359, %v1360
      %v1362 = vrot.slane %v1307, 1
      %v1363 = vsel %vm621, %v1360, %v1362
      %v1364 = vrot.slane %v1308, 1
      %v1365 = vrot.slane %v1309, 1
      %v1366 = vsel %vm621, %v1364, %v1365
      %v1367 = vrot.slane %v1310, 1
      %v1368 = vsel %vm621, %v1365, %v1367
      %v1369 = vrot.slane %v1311, 1
      %v1370 = vrot.slane %v1312, 1
      %v1371 = vsel %vm621, %v1369, %v1370
      %v1372 = vrot.slane %v1313, 1
      %v1373 = vsel %vm621, %v1370, %v1372
      %v1374 = vrot.slane %v1314, 1
      %v1375 = vrot.slane %v1315, 1
      %v1376 = vsel %vm621, %v1374, %v1375
      %v1377 = vrot.slane %v1316, 1
      %v1378 = vsel %vm621, %v1375, %v1377
      %v1379 = vrot.slane %v1317, 1
      %v1380 = vrot.slane %v1318, 1
      %v1381 = vsel %vm621, %v1379, %v1380
      %v1382 = vrot.slane %v1319, 1
      %v1383 = vsel %vm621, %v1380, %v1382
      %v1408 = vadd.f32 %v1268, %v1346
      %v1409 = vadd.f32 %v1269, %v1348
      %v1410 = vadd.f32 %v1270, %v1347
      %v1411 = vadd.f32 %v1271, %v1351
      %v1412 = vadd.f32 %v1272, %v1353
      %v1413 = vadd.f32 %v1273, %v1352
      %v1414 = vadd.f32 %v1274, %v1356
      %v1415 = vadd.f32 %v1275, %v1358
      %v1416 = vadd.f32 %v1276, %v1357
      %v1417 = vadd.f32 %v1277, %v1361
      %v1418 = vadd.f32 %v1278, %v1363
      %v1419 = vadd.f32 %v1279, %v1362
      %v1420 = vadd.f32 %v1280, %v1366
      %v1421 = vadd.f32 %v1281, %v1368
      %v1422 = vadd.f32 %v1282, %v1367
      %v1423 = vadd.f32 %v1283, %v1371
      %v1424 = vadd.f32 %v1284, %v1373
      %v1425 = vadd.f32 %v1285, %v1372
      %v1426 = vadd.f32 %v1286, %v1376
      %v1427 = vadd.f32 %v1287, %v1378
      %v1428 = vadd.f32 %v1288, %v1377
      %v1429 = vadd.f32 %v1289, %v1381
      %v1430 = vadd.f32 %v1290, %v1383
      %v1431 = vadd.f32 %v1291, %v1382
      %v1432 = vlaneseq
      %v1433 = vshrl.u32 %v1432, 7
      %v1434 = vsub.s32 4, %v1433
      %v1435 = vrot.slane %v406, %v1434
      %v1436 = vmul.f32 %v1435, %v374
      %v1437 = vmul.f32 %v1435, %v375
      %v1438 = vmul.f32 %v1435, %v376
      %v1439 = vmul.f32 %v1435, %v377
      %v1440 = vmul.f32 %v1435, %v378
      %v1441 = vmul.f32 %v1435, %v379
      %v1442 = vmul.f32 %v1435, %v380
      %v1443 = vmul.f32 %v1435, %v381
      %v1444 = vmul.f32 %v1435, %v382
      %v1445 = vmul.f32 %v1435, %v383
      %v1446 = vmul.f32 %v1435, %v384
      %v1447 = vmul.f32 %v1435, %v385
      %v1448 = vmul.f32 %v1435, %v386
      %v1449 = vmul.f32 %v1435, %v387
      %v1450 = vmul.f32 %v1435, %v388
      %v1451 = vmul.f32 %v1435, %v389
      %v1452 = vmul.f32 %v1435, %v390
      %v1453 = vmul.f32 %v1435, %v391
      %v1454 = vmul.f32 %v1435, %v392
      %v1455 = vmul.f32 %v1435, %v393
      %v1456 = vmul.f32 %v1435, %v394
      %v1457 = vmul.f32 %v1435, %v395
      %v1458 = vmul.f32 %v1435, %v396
      %v1459 = vmul.f32 %v1435, %v397
      %v1484 = vrot.slane %v1436, 1
      %v1485 = vrot.slane %v1437, 1
      %v1486 = vsel %vm621, %v1484, %v1485
      %v1487 = vrot.slane %v1438, 1
      %v1488 = vsel %vm621, %v1485, %v1487
      %v1489 = vrot.slane %v1439, 1
      %v1490 = vrot.slane %v1440, 1
      %v1491 = vsel %vm621, %v1489, %v1490
      %v1492 = vrot.slane %v1441, 1
      %v1493 = vsel %vm621, %v1490, %v1492
      %v1494 = vrot.slane %v1442, 1
      %v1495 = vrot.slane %v1443, 1
      %v1496 = vsel %vm621, %v1494, %v1495
      %v1497 = vrot.slane %v1444, 1
      %v1498 = vsel %vm621, %v1495, %v1497
      %v1499 = vrot.slane %v1445, 1
      %v1500 = vrot.slane %v1446, 1
      %v1501 = vsel %vm621, %v1499, %v1500
      %v1502 = vrot.slane %v1447, 1
      %v1503 = vsel %vm621, %v1500, %v1502
      %v1504 = vrot.slane %v1448, 1
      %v1505 = vrot.slane %v1449, 1
      %v1506 = vsel %vm621, %v1504, %v1505
      %v1507 = vrot.slane %v1450, 1
      %v1508 = vsel %vm621, %v1505, %v1507
      %v1509 = vrot.slane %v1451, 1
      %v1510 = vrot.slane %v1452, 1
      %v1511 = vsel %vm621, %v1509, %v1510
      %v1512 = vrot.slane %v1453, 1
      %v1513 = vsel %vm621, %v1510, %v1512
      %v1514 = vrot.slane %v1454, 1
      %v1515 = vrot.slane %v1455, 1
      %v1516 = vsel %vm621, %v1514, %v1515
      %v1517 = vrot.slane %v1456, 1
      %v1518 = vsel %vm621, %v1515, %v1517
      %v1519 = vrot.slane %v1457, 1
      %v1520 = vrot.slane %v1458, 1
      %v1521 = vsel %vm621, %v1519, %v1520
      %v1522 = vrot.slane %v1459, 1
      %v1523 = vsel %vm621, %v1520, %v1522
      %v1548 = vadd.f32 %v1408, %v1486
      %v1549 = vadd.f32 %v1409, %v1488
      %v1550 = vadd.f32 %v1410, %v1487
      %v1551 = vadd.f32 %v1411, %v1491
      %v1552 = vadd.f32 %v1412, %v1493
      %v1553 = vadd.f32 %v1413, %v1492
      %v1554 = vadd.f32 %v1414, %v1496
      %v1555 = vadd.f32 %v1415, %v1498
      %v1556 = vadd.f32 %v1416, %v1497
      %v1557 = vadd.f32 %v1417, %v1501
      %v1558 = vadd.f32 %v1418, %v1503
      %v1559 = vadd.f32 %v1419, %v1502
      %v1560 = vadd.f32 %v1420, %v1506
      %v1561 = vadd.f32 %v1421, %v1508
      %v1562 = vadd.f32 %v1422, %v1507
      %v1563 = vadd.f32 %v1423, %v1511
      %v1564 = vadd.f32 %v1424, %v1513
      %v1565 = vadd.f32 %v1425, %v1512
      %v1566 = vadd.f32 %v1426, %v1516
      %v1567 = vadd.f32 %v1427, %v1518
      %v1568 = vadd.f32 %v1428, %v1517
      %v1569 = vadd.f32 %v1429, %v1521
      %v1570 = vadd.f32 %v1430, %v1523
      %v1571 = vadd.f32 %v1431, %v1522
      %v1572 = vlaneseq
      %v1573 = vshrl.u32 %v1572, 7
      %v1574 = vsub.s32 5, %v1573
      %v1575 = vrot.slane %v404, %v1574
      %v1576 = vmul.f32 %v1575, %v374
      %v1577 = vmul.f32 %v1575, %v375
      %v1578 = vmul.f32 %v1575, %v376
      %v1579 = vmul.f32 %v1575, %v377
      %v1580 = vmul.f32 %v1575, %v378
      %v1581 = vmul.f32 %v1575, %v379
      %v1582 = vmul.f32 %v1575, %v380
      %v1583 = vmul.f32 %v1575, %v381
      %v1584 = vmul.f32 %v1575, %v382
      %v1585 = vmul.f32 %v1575, %v383
      %v1586 = vmul.f32 %v1575, %v384
      %v1587 = vmul.f32 %v1575, %v385
      %v1588 = vmul.f32 %v1575, %v386
      %v1589 = vmul.f32 %v1575, %v387
      %v1590 = vmul.f32 %v1575, %v388
      %v1591 = vmul.f32 %v1575, %v389
      %v1592 = vmul.f32 %v1575, %v390
      %v1593 = vmul.f32 %v1575, %v391
      %v1594 = vmul.f32 %v1575, %v392
      %v1595 = vmul.f32 %v1575, %v393
      %v1596 = vmul.f32 %v1575, %v394
      %v1597 = vmul.f32 %v1575, %v395
      %v1598 = vmul.f32 %v1575, %v396
      %v1599 = vmul.f32 %v1575, %v397
      %v1624 = vrot.slane %v1576, 2
      %v1625 = vrot.slane %v1577, 2
      %v1626 = vsel %vm902, %v1624, %v1625
      %v1627 = vrot.slane %v1578, 2
      %v1628 = vsel %vm902, %v1625, %v1627
      %v1629 = vrot.slane %v1579, 2
      %v1630 = vrot.slane %v1580, 2
      %v1631 = vsel %vm902, %v1629, %v1630
      %v1632 = vrot.slane %v1581, 2
      %v1633 = vsel %vm902, %v1630, %v1632
      %v1634 = vrot.slane %v1582, 2
      %v1635 = vrot.slane %v1583, 2
      %v1636 = vsel %vm902, %v1634, %v1635
      %v1637 = vrot.slane %v1584, 2
      %v1638 = vsel %vm902, %v1635, %v1637
      %v1639 = vrot.slane %v1585, 2
      %v1640 = vrot.slane %v1586, 2
      %v1641 = vsel %vm902, %v1639, %v1640
      %v1642 = vrot.slane %v1587, 2
      %v1643 = vsel %vm902, %v1640, %v1642
      %v1644 = vrot.slane %v1588, 2
      %v1645 = vrot.slane %v1589, 2
      %v1646 = vsel %vm902, %v1644, %v1645
      %v1647 = vrot.slane %v1590, 2
      %v1648 = vsel %vm902, %v1645, %v1647
      %v1649 = vrot.slane %v1591, 2
      %v1650 = vrot.slane %v1592, 2
      %v1651 = vsel %vm902, %v1649, %v1650
      %v1652 = vrot.slane %v1593, 2
      %v1653 = vsel %vm902, %v1650, %v1652
      %v1654 = vrot.slane %v1594, 2
      %v1655 = vrot.slane %v1595, 2
      %v1656 = vsel %vm902, %v1654, %v1655
      %v1657 = vrot.slane %v1596, 2
      %v1658 = vsel %vm902, %v1655, %v1657
      %v1659 = vrot.slane %v1597, 2
      %v1660 = vrot.slane %v1598, 2
      %v1661 = vsel %vm902, %v1659, %v1660
      %v1662 = vrot.slane %v1599, 2
      %v1663 = vsel %vm902, %v1660, %v1662
      %v1688 = vadd.f32 %v1548, %v1626
      %v1689 = vadd.f32 %v1549, %v1628
      %v1690 = vadd.f32 %v1550, %v1627
      %v1691 = vadd.f32 %v1551, %v1631
      %v1692 = vadd.f32 %v1552, %v1633
      %v1693 = vadd.f32 %v1553, %v1632
      %v1694 = vadd.f32 %v1554, %v1636
      %v1695 = vadd.f32 %v1555, %v1638
      %v1696 = vadd.f32 %v1556, %v1637
      %v1697 = vadd.f32 %v1557, %v1641
      %v1698 = vadd.f32 %v1558, %v1643
      %v1699 = vadd.f32 %v1559, %v1642
      %v1700 = vadd.f32 %v1560, %v1646
      %v1701 = vadd.f32 %v1561, %v1648
      %v1702 = vadd.f32 %v1562, %v1647
      %v1703 = vadd.f32 %v1563, %v1651
      %v1704 = vadd.f32 %v1564, %v1653
      %v1705 = vadd.f32 %v1565, %v1652
      %v1706 = vadd.f32 %v1566, %v1656
      %v1707 = vadd.f32 %v1567, %v1658
      %v1708 = vadd.f32 %v1568, %v1657
      %v1709 = vadd.f32 %v1569, %v1661
      %v1710 = vadd.f32 %v1570, %v1663
      %v1711 = vadd.f32 %v1571, %v1662
      %v1712 = vlaneseq
      %v1713 = vshrl.u32 %v1712, 7
      %v1714 = vsub.s32 5, %v1713
      %v1715 = vrot.slane %v406, %v1714
      %v1716 = vmul.f32 %v1715, %v374
      %v1717 = vmul.f32 %v1715, %v375
      %v1718 = vmul.f32 %v1715, %v376
      %v1719 = vmul.f32 %v1715, %v377
      %v1720 = vmul.f32 %v1715, %v378
      %v1721 = vmul.f32 %v1715, %v379
      %v1722 = vmul.f32 %v1715, %v380
      %v1723 = vmul.f32 %v1715, %v381
      %v1724 = vmul.f32 %v1715, %v382
      %v1725 = vmul.f32 %v1715, %v383
      %v1726 = vmul.f32 %v1715, %v384
      %v1727 = vmul.f32 %v1715, %v385
      %v1728 = vmul.f32 %v1715, %v386
      %v1729 = vmul.f32 %v1715, %v387
      %v1730 = vmul.f32 %v1715, %v388
      %v1731 = vmul.f32 %v1715, %v389
      %v1732 = vmul.f32 %v1715, %v390
      %v1733 = vmul.f32 %v1715, %v391
      %v1734 = vmul.f32 %v1715, %v392
      %v1735 = vmul.f32 %v1715, %v393
      %v1736 = vmul.f32 %v1715, %v394
      %v1737 = vmul.f32 %v1715, %v395
      %v1738 = vmul.f32 %v1715, %v396
      %v1739 = vmul.f32 %v1715, %v397
      %v1764 = vrot.slane %v1716, 3
      %v1765 = vrot.slane %v1717, 3
      %v1766 = vsel %vm1043, %v1764, %v1765
      %v1767 = vrot.slane %v1718, 3
      %v1768 = vsel %vm1043, %v1765, %v1767
      %v1769 = vrot.slane %v1719, 3
      %v1770 = vrot.slane %v1720, 3
      %v1771 = vsel %vm1043, %v1769, %v1770
      %v1772 = vrot.slane %v1721, 3
      %v1773 = vsel %vm1043, %v1770, %v1772
      %v1774 = vrot.slane %v1722, 3
      %v1775 = vrot.slane %v1723, 3
      %v1776 = vsel %vm1043, %v1774, %v1775
      %v1777 = vrot.slane %v1724, 3
      %v1778 = vsel %vm1043, %v1775, %v1777
      %v1779 = vrot.slane %v1725, 3
      %v1780 = vrot.slane %v1726, 3
      %v1781 = vsel %vm1043, %v1779, %v1780
      %v1782 = vrot.slane %v1727, 3
      %v1783 = vsel %vm1043, %v1780, %v1782
      %v1784 = vrot.slane %v1728, 3
      %v1785 = vrot.slane %v1729, 3
      %v1786 = vsel %vm1043, %v1784, %v1785
      %v1787 = vrot.slane %v1730, 3
      %v1788 = vsel %vm1043, %v1785, %v1787
      %v1789 = vrot.slane %v1731, 3
      %v1790 = vrot.slane %v1732, 3
      %v1791 = vsel %vm1043, %v1789, %v1790
      %v1792 = vrot.slane %v1733, 3
      %v1793 = vsel %vm1043, %v1790, %v1792
      %v1794 = vrot.slane %v1734, 3
      %v1795 = vrot.slane %v1735, 3
      %v1796 = vsel %vm1043, %v1794, %v1795
      %v1797 = vrot.slane %v1736, 3
      %v1798 = vsel %vm1043, %v1795, %v1797
      %v1799 = vrot.slane %v1737, 3
      %v1800 = vrot.slane %v1738, 3
      %v1801 = vsel %vm1043, %v1799, %v1800
      %v1802 = vrot.slane %v1739, 3
      %v1803 = vsel %vm1043, %v1800, %v1802
      %v1828 = vadd.f32 %v1688, %v1766
      %v1829 = vadd.f32 %v1689, %v1768
      %v1830 = vadd.f32 %v1690, %v1767
      %v1831 = vadd.f32 %v1691, %v1771
      %v1832 = vadd.f32 %v1692, %v1773
      %v1833 = vadd.f32 %v1693, %v1772
      %v1834 = vadd.f32 %v1694, %v1776
      %v1835 = vadd.f32 %v1695, %v1778
      %v1836 = vadd.f32 %v1696, %v1777
      %v1837 = vadd.f32 %v1697, %v1781
      %v1838 = vadd.f32 %v1698, %v1783
      %v1839 = vadd.f32 %v1699, %v1782
      %v1840 = vadd.f32 %v1700, %v1786
      %v1841 = vadd.f32 %v1701, %v1788
      %v1842 = vadd.f32 %v1702, %v1787
      %v1843 = vadd.f32 %v1703, %v1791
      %v1844 = vadd.f32 %v1704, %v1793
      %v1845 = vadd.f32 %v1705, %v1792
      %v1846 = vadd.f32 %v1706, %v1796
      %v1847 = vadd.f32 %v1707, %v1798
      %v1848 = vadd.f32 %v1708, %v1797
      %v1849 = vadd.f32 %v1709, %v1801
      %v1850 = vadd.f32 %v1710, %v1803
      %v1851 = vadd.f32 %v1711, %v1802
      %v1852 = vlaneseq
      %v1853 = vshrl.u32 %v1852, 7
      %v1854 = vsub.s32 6, %v1853
      %v1855 = vrot.slane %v404, %v1854
      %v1856 = vmul.f32 %v1855, %v377
      %v1857 = vmul.f32 %v1855, %v378
      %v1858 = vmul.f32 %v1855, %v379
      %v1859 = vmul.f32 %v1855, %v380
      %v1860 = vmul.f32 %v1855, %v381
      %v1861 = vmul.f32 %v1855, %v382
      %v1862 = vmul.f32 %v1855, %v383
      %v1863 = vmul.f32 %v1855, %v384
      %v1864 = vmul.f32 %v1855, %v385
      %v1865 = vmul.f32 %v1855, %v386
      %v1866 = vmul.f32 %v1855, %v387
      %v1867 = vmul.f32 %v1855, %v388
      %v1868 = vmul.f32 %v1855, %v389
      %v1869 = vmul.f32 %v1855, %v390
      %v1870 = vmul.f32 %v1855, %v391
      %v1871 = vmul.f32 %v1855, %v392
      %v1872 = vmul.f32 %v1855, %v393
      %v1873 = vmul.f32 %v1855, %v394
      %v1874 = vmul.f32 %v1855, %v395
      %v1875 = vmul.f32 %v1855, %v396
      %v1876 = vmul.f32 %v1855, %v397
      %v1877 = vmul.f32 %v1855, %v398
      %v1878 = vmul.f32 %v1855, %v399
      %v1879 = vmul.f32 %v1855, %v400
      %v1880 = vadd.f32 %v1828, %v1856
      %v1881 = vadd.f32 %v1829, %v1857
      %v1882 = vadd.f32 %v1830, %v1858
      %v1883 = vadd.f32 %v1831, %v1859
      %v1884 = vadd.f32 %v1832, %v1860
      %v1885 = vadd.f32 %v1833, %v1861
      %v1886 = vadd.f32 %v1834, %v1862
      %v1887 = vadd.f32 %v1835, %v1863
      %v1888 = vadd.f32 %v1836, %v1864
      %v1889 = vadd.f32 %v1837, %v1865
      %v1890 = vadd.f32 %v1838, %v1866
      %v1891 = vadd.f32 %v1839, %v1867
      %v1892 = vadd.f32 %v1840, %v1868
      %v1893 = vadd.f32 %v1841, %v1869
      %v1894 = vadd.f32 %v1842, %v1870
      %v1895 = vadd.f32 %v1843, %v1871
      %v1896 = vadd.f32 %v1844, %v1872
      %v1897 = vadd.f32 %v1845, %v1873
      %v1898 = vadd.f32 %v1846, %v1874
      %v1899 = vadd.f32 %v1847, %v1875
      %v1900 = vadd.f32 %v1848, %v1876
      %v1901 = vadd.f32 %v1849, %v1877
      %v1902 = vadd.f32 %v1850, %v1878
      %v1903 = vadd.f32 %v1851, %v1879
      %v1904 = vlaneseq
      %v1905 = vshrl.u32 %v1904, 7
      %v1906 = vsub.s32 6, %v1905
      %v1907 = vrot.slane %v406, %v1906
      %v1908 = vmul.f32 %v1907, %v380
      %v1909 = vmul.f32 %v1907, %v381
      %v1910 = vmul.f32 %v1907, %v383
      %v1911 = vmul.f32 %v1907, %v384
      %v1912 = vmul.f32 %v1907, %v386
      %v1913 = vmul.f32 %v1907, %v387
      %v1914 = vmul.f32 %v1907, %v389
      %v1915 = vmul.f32 %v1907, %v390
      %v1916 = vmul.f32 %v1907, %v392
      %v1917 = vmul.f32 %v1907, %v393
      %v1918 = vmul.f32 %v1907, %v395
      %v1919 = vmul.f32 %v1907, %v396
      %v1920 = vmul.f32 %v1907, %v398
      %v1921 = vmul.f32 %v1907, %v399
      %v1922 = vmul.f32 %v1907, %v401
      %v1923 = vmul.f32 %v1907, %v402
      %v1940 = vrot.slane %v1908, 7
      %v1941 = vrot.slane %v1909, 7
      %v1942 = vsel %vm496, %v1940, %v1941
      %v1943 = vrot.slane %v1910, 7
      %v1944 = vrot.slane %v1911, 7
      %v1945 = vsel %vm496, %v1943, %v1944
      %v1946 = vrot.slane %v1912, 7
      %v1947 = vrot.slane %v1913, 7
      %v1948 = vsel %vm496, %v1946, %v1947
      %v1949 = vrot.slane %v1914, 7
      %v1950 = vrot.slane %v1915, 7
      %v1951 = vsel %vm496, %v1949, %v1950
      %v1952 = vrot.slane %v1916, 7
      %v1953 = vrot.slane %v1917, 7
      %v1954 = vsel %vm496, %v1952, %v1953
      %v1955 = vrot.slane %v1918, 7
      %v1956 = vrot.slane %v1919, 7
      %v1957 = vsel %vm496, %v1955, %v1956
      %v1958 = vrot.slane %v1920, 7
      %v1959 = vrot.slane %v1921, 7
      %v1960 = vsel %vm496, %v1958, %v1959
      %v1961 = vrot.slane %v1922, 7
      %v1962 = vrot.slane %v1923, 7
      %v1963 = vsel %vm496, %v1961, %v1962
      %v1988 = vadd.f32 %v1880, %v1940
      %v1989 = vadd.f32 %v1881, %v1942
      %v1990 = vadd.f32 %v1882, %v1941
      %v1991 = vadd.f32 %v1883, %v1943
      %v1992 = vadd.f32 %v1884, %v1945
      %v1993 = vadd.f32 %v1885, %v1944
      %v1994 = vadd.f32 %v1886, %v1946
      %v1995 = vadd.f32 %v1887, %v1948
      %v1996 = vadd.f32 %v1888, %v1947
      %v1997 = vadd.f32 %v1889, %v1949
      %v1998 = vadd.f32 %v1890, %v1951
      %v1999 = vadd.f32 %v1891, %v1950
      %v2000 = vadd.f32 %v1892, %v1952
      %v2001 = vadd.f32 %v1893, %v1954
      %v2002 = vadd.f32 %v1894, %v1953
      %v2003 = vadd.f32 %v1895, %v1955
      %v2004 = vadd.f32 %v1896, %v1957
      %v2005 = vadd.f32 %v1897, %v1956
      %v2006 = vadd.f32 %v1898, %v1958
      %v2007 = vadd.f32 %v1899, %v1960
      %v2008 = vadd.f32 %v1900, %v1959
      %v2009 = vadd.f32 %v1901, %v1961
      %v2010 = vadd.f32 %v1902, %v1963
      %v2011 = vadd.f32 %v1903, %v1962
      %v2012 = vlaneseq
      %v2013 = vshrl.u32 %v2012, 7
      %v2014 = vsub.s32 7, %v2013
      %v2015 = vrot.slane %v404, %v2014
      %v2016 = vmul.f32 %v2015, %v377
      %v2017 = vmul.f32 %v2015, %v378
      %v2018 = vmul.f32 %v2015, %v379
      %v2019 = vmul.f32 %v2015, %v380
      %v2020 = vmul.f32 %v2015, %v381
      %v2021 = vmul.f32 %v2015, %v382
      %v2022 = vmul.f32 %v2015, %v383
      %v2023 = vmul.f32 %v2015, %v384
      %v2024 = vmul.f32 %v2015, %v385
      %v2025 = vmul.f32 %v2015, %v386
      %v2026 = vmul.f32 %v2015, %v387
      %v2027 = vmul.f32 %v2015, %v388
      %v2028 = vmul.f32 %v2015, %v389
      %v2029 = vmul.f32 %v2015, %v390
      %v2030 = vmul.f32 %v2015, %v391
      %v2031 = vmul.f32 %v2015, %v392
      %v2032 = vmul.f32 %v2015, %v393
      %v2033 = vmul.f32 %v2015, %v394
      %v2034 = vmul.f32 %v2015, %v395
      %v2035 = vmul.f32 %v2015, %v396
      %v2036 = vmul.f32 %v2015, %v397
      %v2037 = vmul.f32 %v2015, %v398
      %v2038 = vmul.f32 %v2015, %v399
      %v2039 = vmul.f32 %v2015, %v400
      %v2064 = vrot.slane %v2016, 1
      %v2065 = vrot.slane %v2017, 1
      %v2066 = vsel %vm621, %v2064, %v2065
      %v2067 = vrot.slane %v2018, 1
      %v2068 = vsel %vm621, %v2065, %v2067
      %v2069 = vrot.slane %v2019, 1
      %v2070 = vrot.slane %v2020, 1
      %v2071 = vsel %vm621, %v2069, %v2070
      %v2072 = vrot.slane %v2021, 1
      %v2073 = vsel %vm621, %v2070, %v2072
      %v2074 = vrot.slane %v2022, 1
      %v2075 = vrot.slane %v2023, 1
      %v2076 = vsel %vm621, %v2074, %v2075
      %v2077 = vrot.slane %v2024, 1
      %v2078 = vsel %vm621, %v2075, %v2077
      %v2079 = vrot.slane %v2025, 1
      %v2080 = vrot.slane %v2026, 1
      %v2081 = vsel %vm621, %v2079, %v2080
      %v2082 = vrot.slane %v2027, 1
      %v2083 = vsel %vm621, %v2080, %v2082
      %v2084 = vrot.slane %v2028, 1
      %v2085 = vrot.slane %v2029, 1
      %v2086 = vsel %vm621, %v2084, %v2085
      %v2087 = vrot.slane %v2030, 1
      %v2088 = vsel %vm621, %v2085, %v2087
      %v2089 = vrot.slane %v2031, 1
      %v2090 = vrot.slane %v2032, 1
      %v2091 = vsel %vm621, %v2089, %v2090
      %v2092 = vrot.slane %v2033, 1
      %v2093 = vsel %vm621, %v2090, %v2092
      %v2094 = vrot.slane %v2034, 1
      %v2095 = vrot.slane %v2035, 1
      %v2096 = vsel %vm621, %v2094, %v2095
      %v2097 = vrot.slane %v2036, 1
      %v2098 = vsel %vm621, %v2095, %v2097
      %v2099 = vrot.slane %v2037, 1
      %v2100 = vrot.slane %v2038, 1
      %v2101 = vsel %vm621, %v2099, %v2100
      %v2102 = vrot.slane %v2039, 1
      %v2103 = vsel %vm621, %v2100, %v2102
      %v2128 = vadd.f32 %v1988, %v2066
      %v2129 = vadd.f32 %v1989, %v2068
      %v2130 = vadd.f32 %v1990, %v2067
      %v2131 = vadd.f32 %v1991, %v2071
      %v2132 = vadd.f32 %v1992, %v2073
      %v2133 = vadd.f32 %v1993, %v2072
      %v2134 = vadd.f32 %v1994, %v2076
      %v2135 = vadd.f32 %v1995, %v2078
      %v2136 = vadd.f32 %v1996, %v2077
      %v2137 = vadd.f32 %v1997, %v2081
      %v2138 = vadd.f32 %v1998, %v2083
      %v2139 = vadd.f32 %v1999, %v2082
      %v2140 = vadd.f32 %v2000, %v2086
      %v2141 = vadd.f32 %v2001, %v2088
      %v2142 = vadd.f32 %v2002, %v2087
      %v2143 = vadd.f32 %v2003, %v2091
      %v2144 = vadd.f32 %v2004, %v2093
      %v2145 = vadd.f32 %v2005, %v2092
      %v2146 = vadd.f32 %v2006, %v2096
      %v2147 = vadd.f32 %v2007, %v2098
      %v2148 = vadd.f32 %v2008, %v2097
      %v2149 = vadd.f32 %v2009, %v2101
      %v2150 = vadd.f32 %v2010, %v2103
      %v2151 = vadd.f32 %v2011, %v2102
      %v2152 = vlaneseq
      %v2153 = vshrl.u32 %v2152, 7
      %v2154 = vsub.s32 7, %v2153
      %v2155 = vrot.slane %v406, %v2154
      %v2156 = vmul.f32 %v2155, %v380
      %v2157 = vmul.f32 %v2155, %v381
      %v2158 = vmul.f32 %v2155, %v382
      %v2159 = vmul.f32 %v2155, %v383
      %v2160 = vmul.f32 %v2155, %v384
      %v2161 = vmul.f32 %v2155, %v385
      %v2162 = vmul.f32 %v2155, %v386
      %v2163 = vmul.f32 %v2155, %v387
      %v2164 = vmul.f32 %v2155, %v388
      %v2165 = vmul.f32 %v2155, %v389
      %v2166 = vmul.f32 %v2155, %v390
      %v2167 = vmul.f32 %v2155, %v391
      %v2168 = vmul.f32 %v2155, %v392
      %v2169 = vmul.f32 %v2155, %v393
      %v2170 = vmul.f32 %v2155, %v394
      %v2171 = vmul.f32 %v2155, %v395
      %v2172 = vmul.f32 %v2155, %v396
      %v2173 = vmul.f32 %v2155, %v397
      %v2174 = vmul.f32 %v2155, %v398
      %v2175 = vmul.f32 %v2155, %v399
      %v2176 = vmul.f32 %v2155, %v400
      %v2177 = vmul.f32 %v2155, %v401
      %v2178 = vmul.f32 %v2155, %v402
      %v2179 = vmul.f32 %v2155, %v403
      %v2204 = vrot.slane %v2156, 1
      %v2205 = vrot.slane %v2157, 1
      %v2206 = vsel %vm621, %v2204, %v2205
      %v2207 = vrot.slane %v2158, 1
      %v2208 = vsel %vm621, %v2205, %v2207
      %v2209 = vrot.slane %v2159, 1
      %v2210 = vrot.slane %v2160, 1
      %v2211 = vsel %vm621, %v2209, %v2210
      %v2212 = vrot.slane %v2161, 1
      %v2213 = vsel %vm621, %v2210, %v2212
      %v2214 = vrot.slane %v2162, 1
      %v2215 = vrot.slane %v2163, 1
      %v2216 = vsel %vm621, %v2214, %v2215
      %v2217 = vrot.slane %v2164, 1
      %v2218 = vsel %vm621, %v2215, %v2217
      %v2219 = vrot.slane %v2165, 1
      %v2220 = vrot.slane %v2166, 1
      %v2221 = vsel %vm621, %v2219, %v2220
      %v2222 = vrot.slane %v2167, 1
      %v2223 = vsel %vm621, %v2220, %v2222
      %v2224 = vrot.slane %v2168, 1
      %v2225 = vrot.slane %v2169, 1
      %v2226 = vsel %vm621, %v2224, %v2225
      %v2227 = vrot.slane %v2170, 1
      %v2228 = vsel %vm621, %v2225, %v2227
      %v2229 = vrot.slane %v2171, 1
      %v2230 = vrot.slane %v2172, 1
      %v2231 = vsel %vm621, %v2229, %v2230
      %v2232 = vrot.slane %v2173, 1
      %v2233 = vsel %vm621, %v2230, %v2232
      %v2234 = vrot.slane %v2174, 1
      %v2235 = vrot.slane %v2175, 1
      %v2236 = vsel %vm621, %v2234, %v2235
      %v2237 = vrot.slane %v2176, 1
      %v2238 = vsel %vm621, %v2235, %v2237
      %v2239 = vrot.slane %v2177, 1
      %v2240 = vrot.slane %v2178, 1
      %v2241 = vsel %vm621, %v2239, %v2240
      %v2242 = vrot.slane %v2179, 1
      %v2243 = vsel %vm621, %v2240, %v2242
      %v2268 = vadd.f32 %v2128, %v2206
      %v2269 = vadd.f32 %v2129, %v2208
      %v2270 = vadd.f32 %v2130, %v2207
      %v2271 = vadd.f32 %v2131, %v2211
      %v2272 = vadd.f32 %v2132, %v2213
      %v2273 = vadd.f32 %v2133, %v2212
      %v2274 = vadd.f32 %v2134, %v2216
      %v2275 = vadd.f32 %v2135, %v2218
      %v2276 = vadd.f32 %v2136, %v2217
      %v2277 = vadd.f32 %v2137, %v2221
      %v2278 = vadd.f32 %v2138, %v2223
      %v2279 = vadd.f32 %v2139, %v2222
      %v2280 = vadd.f32 %v2140, %v2226
      %v2281 = vadd.f32 %v2141, %v2228
      %v2282 = vadd.f32 %v2142, %v2227
      %v2283 = vadd.f32 %v2143, %v2231
      %v2284 = vadd.f32 %v2144, %v2233
      %v2285 = vadd.f32 %v2145, %v2232
      %v2286 = vadd.f32 %v2146, %v2236
      %v2287 = vadd.f32 %v2147, %v2238
      %v2288 = vadd.f32 %v2148, %v2237
      %v2289 = vadd.f32 %v2149, %v2241
      %v2290 = vadd.f32 %v2150, %v2243
      %v2291 = vadd.f32 %v2151, %v2242
      %v2292 = vlaneseq
      %v2293 = vshrl.u32 %v2292, 7
      %v2294 = vsub.s32 0, %v2293
      %v2295 = vrot.slane %v405, %v2294
      %v2296 = vmul.f32 %v2295, %v377
      %v2297 = vmul.f32 %v2295, %v378
      %v2298 = vmul.f32 %v2295, %v379
      %v2299 = vmul.f32 %v2295, %v380
      %v2300 = vmul.f32 %v2295, %v381
      %v2301 = vmul.f32 %v2295, %v382
      %v2302 = vmul.f32 %v2295, %v383
      %v2303 = vmul.f32 %v2295, %v384
      %v2304 = vmul.f32 %v2295, %v385
      %v2305 = vmul.f32 %v2295, %v386
      %v2306 = vmul.f32 %v2295, %v387
      %v2307 = vmul.f32 %v2295, %v388
      %v2308 = vmul.f32 %v2295, %v389
      %v2309 = vmul.f32 %v2295, %v390
      %v2310 = vmul.f32 %v2295, %v391
      %v2311 = vmul.f32 %v2295, %v392
      %v2312 = vmul.f32 %v2295, %v393
      %v2313 = vmul.f32 %v2295, %v394
      %v2314 = vmul.f32 %v2295, %v395
      %v2315 = vmul.f32 %v2295, %v396
      %v2316 = vmul.f32 %v2295, %v397
      %v2317 = vmul.f32 %v2295, %v398
      %v2318 = vmul.f32 %v2295, %v399
      %v2319 = vmul.f32 %v2295, %v400
      %v2344 = vrot.slane %v2296, 2
      %v2345 = vrot.slane %v2297, 2
      %v2346 = vsel %vm902, %v2344, %v2345
      %v2347 = vrot.slane %v2298, 2
      %v2348 = vsel %vm902, %v2345, %v2347
      %v2349 = vrot.slane %v2299, 2
      %v2350 = vrot.slane %v2300, 2
      %v2351 = vsel %vm902, %v2349, %v2350
      %v2352 = vrot.slane %v2301, 2
      %v2353 = vsel %vm902, %v2350, %v2352
      %v2354 = vrot.slane %v2302, 2
      %v2355 = vrot.slane %v2303, 2
      %v2356 = vsel %vm902, %v2354, %v2355
      %v2357 = vrot.slane %v2304, 2
      %v2358 = vsel %vm902, %v2355, %v2357
      %v2359 = vrot.slane %v2305, 2
      %v2360 = vrot.slane %v2306, 2
      %v2361 = vsel %vm902, %v2359, %v2360
      %v2362 = vrot.slane %v2307, 2
      %v2363 = vsel %vm902, %v2360, %v2362
      %v2364 = vrot.slane %v2308, 2
      %v2365 = vrot.slane %v2309, 2
      %v2366 = vsel %vm902, %v2364, %v2365
      %v2367 = vrot.slane %v2310, 2
      %v2368 = vsel %vm902, %v2365, %v2367
      %v2369 = vrot.slane %v2311, 2
      %v2370 = vrot.slane %v2312, 2
      %v2371 = vsel %vm902, %v2369, %v2370
      %v2372 = vrot.slane %v2313, 2
      %v2373 = vsel %vm902, %v2370, %v2372
      %v2374 = vrot.slane %v2314, 2
      %v2375 = vrot.slane %v2315, 2
      %v2376 = vsel %vm902, %v2374, %v2375
      %v2377 = vrot.slane %v2316, 2
      %v2378 = vsel %vm902, %v2375, %v2377
      %v2379 = vrot.slane %v2317, 2
      %v2380 = vrot.slane %v2318, 2
      %v2381 = vsel %vm902, %v2379, %v2380
      %v2382 = vrot.slane %v2319, 2
      %v2383 = vsel %vm902, %v2380, %v2382
      %v2408 = vadd.f32 %v2268, %v2346
      %v2409 = vadd.f32 %v2269, %v2348
      %v2410 = vadd.f32 %v2270, %v2347
      %v2411 = vadd.f32 %v2271, %v2351
      %v2412 = vadd.f32 %v2272, %v2353
      %v2413 = vadd.f32 %v2273, %v2352
      %v2414 = vadd.f32 %v2274, %v2356
      %v2415 = vadd.f32 %v2275, %v2358
      %v2416 = vadd.f32 %v2276, %v2357
      %v2417 = vadd.f32 %v2277, %v2361
      %v2418 = vadd.f32 %v2278, %v2363
      %v2419 = vadd.f32 %v2279, %v2362
      %v2420 = vadd.f32 %v2280, %v2366
      %v2421 = vadd.f32 %v2281, %v2368
      %v2422 = vadd.f32 %v2282, %v2367
      %v2423 = vadd.f32 %v2283, %v2371
      %v2424 = vadd.f32 %v2284, %v2373
      %v2425 = vadd.f32 %v2285, %v2372
      %v2426 = vadd.f32 %v2286, %v2376
      %v2427 = vadd.f32 %v2287, %v2378
      %v2428 = vadd.f32 %v2288, %v2377
      %v2429 = vadd.f32 %v2289, %v2381
      %v2430 = vadd.f32 %v2290, %v2383
      %v2431 = vadd.f32 %v2291, %v2382
      %v2432 = vlaneseq
      %v2433 = vshrl.u32 %v2432, 7
      %v2434 = vsub.s32 0, %v2433
      %v2435 = vrot.slane %v407, %v2434
      %v2436 = vmul.f32 %v2435, %v380
      %v2437 = vmul.f32 %v2435, %v381
      %v2438 = vmul.f32 %v2435, %v382
      %v2439 = vmul.f32 %v2435, %v383
      %v2440 = vmul.f32 %v2435, %v384
      %v2441 = vmul.f32 %v2435, %v385
      %v2442 = vmul.f32 %v2435, %v386
      %v2443 = vmul.f32 %v2435, %v387
      %v2444 = vmul.f32 %v2435, %v388
      %v2445 = vmul.f32 %v2435, %v389
      %v2446 = vmul.f32 %v2435, %v390
      %v2447 = vmul.f32 %v2435, %v391
      %v2448 = vmul.f32 %v2435, %v392
      %v2449 = vmul.f32 %v2435, %v393
      %v2450 = vmul.f32 %v2435, %v394
      %v2451 = vmul.f32 %v2435, %v395
      %v2452 = vmul.f32 %v2435, %v396
      %v2453 = vmul.f32 %v2435, %v397
      %v2454 = vmul.f32 %v2435, %v398
      %v2455 = vmul.f32 %v2435, %v399
      %v2456 = vmul.f32 %v2435, %v400
      %v2457 = vmul.f32 %v2435, %v401
      %v2458 = vmul.f32 %v2435, %v402
      %v2459 = vmul.f32 %v2435, %v403
      %v2484 = vrot.slane %v2436, 3
      %v2485 = vrot.slane %v2437, 3
      %v2486 = vsel %vm1043, %v2484, %v2485
      %v2487 = vrot.slane %v2438, 3
      %v2488 = vsel %vm1043, %v2485, %v2487
      %v2489 = vrot.slane %v2439, 3
      %v2490 = vrot.slane %v2440, 3
      %v2491 = vsel %vm1043, %v2489, %v2490
      %v2492 = vrot.slane %v2441, 3
      %v2493 = vsel %vm1043, %v2490, %v2492
      %v2494 = vrot.slane %v2442, 3
      %v2495 = vrot.slane %v2443, 3
      %v2496 = vsel %vm1043, %v2494, %v2495
      %v2497 = vrot.slane %v2444, 3
      %v2498 = vsel %vm1043, %v2495, %v2497
      %v2499 = vrot.slane %v2445, 3
      %v2500 = vrot.slane %v2446, 3
      %v2501 = vsel %vm1043, %v2499, %v2500
      %v2502 = vrot.slane %v2447, 3
      %v2503 = vsel %vm1043, %v2500, %v2502
      %v2504 = vrot.slane %v2448, 3
      %v2505 = vrot.slane %v2449, 3
      %v2506 = vsel %vm1043, %v2504, %v2505
      %v2507 = vrot.slane %v2450, 3
      %v2508 = vsel %vm1043, %v2505, %v2507
      %v2509 = vrot.slane %v2451, 3
      %v2510 = vrot.slane %v2452, 3
      %v2511 = vsel %vm1043, %v2509, %v2510
      %v2512 = vrot.slane %v2453, 3
      %v2513 = vsel %vm1043, %v2510, %v2512
      %v2514 = vrot.slane %v2454, 3
      %v2515 = vrot.slane %v2455, 3
      %v2516 = vsel %vm1043, %v2514, %v2515
      %v2517 = vrot.slane %v2456, 3
      %v2518 = vsel %vm1043, %v2515, %v2517
      %v2519 = vrot.slane %v2457, 3
      %v2520 = vrot.slane %v2458, 3
      %v2521 = vsel %vm1043, %v2519, %v2520
      %v2522 = vrot.slane %v2459, 3
      %v2523 = vsel %vm1043, %v2520, %v2522
      %v2548 = vadd.f32 %v2408, %v2486
      %v2549 = vadd.f32 %v2409, %v2488
      %v2550 = vadd.f32 %v2410, %v2487
      %v2551 = vadd.f32 %v2411, %v2491
      %v2552 = vadd.f32 %v2412, %v2493
      %v2553 = vadd.f32 %v2413, %v2492
      %v2554 = vadd.f32 %v2414, %v2496
      %v2555 = vadd.f32 %v2415, %v2498
      %v2556 = vadd.f32 %v2416, %v2497
      %v2557 = vadd.f32 %v2417, %v2501
      %v2558 = vadd.f32 %v2418, %v2503
      %v2559 = vadd.f32 %v2419, %v2502
      %v2560 = vadd.f32 %v2420, %v2506
      %v2561 = vadd.f32 %v2421, %v2508
      %v2562 = vadd.f32 %v2422, %v2507
      %v2563 = vadd.f32 %v2423, %v2511
      %v2564 = vadd.f32 %v2424, %v2513
      %v2565 = vadd.f32 %v2425, %v2512
      %v2566 = vadd.f32 %v2426, %v2516
      %v2567 = vadd.f32 %v2427, %v2518
      %v2568 = vadd.f32 %v2428, %v2517
      %v2569 = vadd.f32 %v2429, %v2521
      %v2570 = vadd.f32 %v2430, %v2523
      %v2571 = vadd.f32 %v2431, %v2522
      %v2596 = vrot.slane %v2548, 1
      %v2597 = vrot.slane %v2549, 1
      %v2598 = vsel %vm621, %v2596, %v2597
      %v2599 = vrot.slane %v2550, 1
      %v2600 = vsel %vm621, %v2597, %v2599
      %v2601 = vrot.slane %v2551, 1
      %v2602 = vrot.slane %v2552, 1
      %v2603 = vsel %vm621, %v2601, %v2602
      %v2604 = vrot.slane %v2553, 1
      %v2605 = vsel %vm621, %v2602, %v2604
      %v2606 = vrot.slane %v2554, 1
      %v2607 = vrot.slane %v2555, 1
      %v2608 = vsel %vm621, %v2606, %v2607
      %v2609 = vrot.slane %v2556, 1
      %v2610 = vsel %vm621, %v2607, %v2609
      %v2611 = vrot.slane %v2557, 1
      %v2612 = vrot.slane %v2558, 1
      %v2613 = vsel %vm621, %v2611, %v2612
      %v2614 = vrot.slane %v2559, 1
      %v2615 = vsel %vm621, %v2612, %v2614
      %v2616 = vrot.slane %v2560, 1
      %v2617 = vrot.slane %v2561, 1
      %v2618 = vsel %vm621, %v2616, %v2617
      %v2619 = vrot.slane %v2562, 1
      %v2620 = vsel %vm621, %v2617, %v2619
      %v2621 = vrot.slane %v2563, 1
      %v2622 = vrot.slane %v2564, 1
      %v2623 = vsel %vm621, %v2621, %v2622
      %v2624 = vrot.slane %v2565, 1
      %v2625 = vsel %vm621, %v2622, %v2624
      %v2626 = vrot.slane %v2566, 1
      %v2627 = vrot.slane %v2567, 1
      %v2628 = vsel %vm621, %v2626, %v2627
      %v2629 = vrot.slane %v2568, 1
      %v2630 = vsel %vm621, %v2627, %v2629
      %v2631 = vrot.slane %v2569, 1
      %v2632 = vrot.slane %v2570, 1
      %v2633 = vsel %vm621, %v2631, %v2632
      %v2634 = vrot.slane %v2571, 1
      %v2635 = vsel %vm621, %v2632, %v2634
      %v2636 = vld [vmem:[%s3] sm:$0xf]
      %vm2637 = vcmask 31744
      %v2638 = vsel %vm2637, %v2598, 0
      %v2640 = vsel %vm2637, %v2600, 0
      %v2642 = vsel %vm2637, %v2603, 0
      %v2644 = vsel %vm2637, %v2605, 0
      %v2646 = vsel %vm2637, %v2608, 0
      %v2648 = vsel %vm2637, %v2610, 0
      %v2650 = vsel %vm2637, %v2613, 0
      %v2652 = vsel %vm2637, %v2615, 0
      %v2654 = vsel %vm2637, %v2618, 0
      %v2656 = vsel %vm2637, %v2620, 0
      %v2658 = vsel %vm2637, %v2623, 0
      %v2660 = vsel %vm2637, %v2625, 0
      %v2662 = vsel %vm2637, %v2628, 0
      %v2664 = vsel %vm2637, %v2630, 0
      %v2666 = vsel %vm2637, %v2633, 0
      %v2668 = vsel %vm2637, %v2635, 0
      %vm2670 = vcmask 1043456
      %v2672 = vsel %vm2670, %v2636, 0
      %2674 = vmatprep.subr.mxu0 0.0
      %2675 = vmatpush1.msra.mxu0 %v2672
      %2676 = vmatprep.subr.mxu0 0.0
      %2677 = vmatpush1.msra.mxu0 0.0
      %2678 = vmatprep.subr.mxu0 0.0
      %2679 = vmatpush1.msra.mxu0 0.0
      %2680 = vmatprep.subr.mxu0 0.0
      %2681 = vmatpush1.msra.mxu0 0.0
      %2682 = vmatprep.subr.mxu0 0.0
      %2683 = vmatpush1.msra.mxu0 0.0
      %2684 = vmatprep.subr.mxu0 0.0
      %2685 = vmatpush1.msra.mxu0 0.0
      %2686 = vmatprep.subr.mxu0 0.0
      %2687 = vmatpush1.msra.mxu0 0.0
      %2688 = vmatprep.subr.mxu0 0.0
      %2689 = vmatpush1.msra.mxu0 0.0
      %2690 = vmatprep.subr.mxu0 0.0
      %2691 = vmatpush1.msra.mxu0 0.0
      %2692 = vmatprep.subr.mxu0 0.0
      %2693 = vmatpush1.msra.mxu0 0.0
      %2694 = vmatprep.subr.mxu0 0.0
      %2695 = vmatpush1.msra.mxu0 0.0
      %2696 = vmatprep.subr.mxu0 0.0
      %2697 = vmatpush1.msra.mxu0 0.0
      %2698 = vmatprep.subr.mxu0 0.0
      %2699 = vmatpush1.msra.mxu0 0.0
      %2700 = vmatprep.subr.mxu0 0.0
      %2701 = vmatpush1.msra.mxu0 0.0
      %2702 = vmatprep.subr.mxu0 0.0
      %2703 = vmatpush1.msra.mxu0 0.0
      %2704 = vmatprep.subr.mxu0 0.0
      %2705 = vmatpush1.msra.mxu0 0.0
      %2706 = vmatprep.subr.mxu0 0.0
      %2707 = vmatpush1.msra.mxu0 0.0
      %2708 = vmatprep.subr.mxu0 0.0
      %2709 = vmatpush1.msra.mxu0 0.0
      %2710 = vmatprep.subr.mxu0 0.0
      %2711 = vmatpush1.msra.mxu0 0.0
      %2712 = vmatprep.subr.mxu0 0.0
      %2713 = vmatpush1.msra.mxu0 0.0
      %2714 = vmatprep.subr.mxu0 0.0
      %2715 = vmatpush1.msra.mxu0 0.0
      %2716 = vmatprep.subr.mxu0 0.0
      %2717 = vmatpush1.msra.mxu0 0.0
      %2718 = vmatprep.subr.mxu0 0.0
      %2719 = vmatpush1.msra.mxu0 0.0
      %2720 = vmatprep.subr.mxu0 0.0
      %2721 = vmatpush1.msra.mxu0 0.0
      %2722 = vmatprep.subr.mxu0 0.0
      %2723 = vmatpush1.msra.mxu0 0.0
      %2724 = vmatprep.subr.mxu0 0.0
      %2725 = vmatpush1.msra.mxu0 0.0
      %2726 = vmatprep.subr.mxu0 0.0
      %2727 = vmatpush1.msra.mxu0 0.0
      %2728 = vmatprep.subr.mxu0 0.0
      %2729 = vmatpush1.msra.mxu0 0.0
      %2730 = vmatprep.subr.mxu0 0.0
      %2731 = vmatpush1.msra.mxu0 0.0
      %2732 = vmatprep.subr.mxu0 0.0
      %2733 = vmatpush1.msra.mxu0 0.0
      %2734 = vmatprep.subr.mxu0 0.0
      %2735 = vmatpush1.msra.mxu0 0.0
      %2736 = vmatprep.subr.mxu0 0.0
      %2737 = vmatpush1.msra.mxu0 0.0
      %2738 = vmatprep.mubr.f32.mxu0 0.0
      %2739 = vmatmul.mubr.f32.gmra.mrb[0].mxu0 %v2638
      %v2740 = vpop.f32.mrb[0].mxu0
      %v2741 = vadd.f32 0.0, %v2740
      %v2742 = vpop.f32.mrb[0].mxu0
      %2743 = vmatprep.mubr.f32.mxu0 0.0
      %2744 = vmatmul.mubr.f32.gmra.mrb[0].mxu0 %v2640
      %v2745 = vpop.f32.mrb[0].mxu0
      %v2746 = vadd.f32 0.0, %v2745
      %v2747 = vpop.f32.mrb[0].mxu0
      %2748 = vmatprep.mubr.f32.mxu0 0.0
      %2749 = vmatmul.mubr.f32.gmra.mrb[0].mxu0 %v2642
      %v2750 = vpop.f32.mrb[0].mxu0
      %v2751 = vadd.f32 0.0, %v2750
      %v2752 = vpop.f32.mrb[0].mxu0
      %2753 = vmatprep.mubr.f32.mxu0 0.0
      %2754 = vmatmul.mubr.f32.gmra.mrb[0].mxu0 %v2644
      %v2755 = vpop.f32.mrb[0].mxu0
      %v2756 = vadd.f32 0.0, %v2755
      %v2757 = vpop.f32.mrb[0].mxu0
      %2758 = vmatprep.mubr.f32.mxu0 0.0
      %2759 = vmatmul.mubr.f32.gmra.mrb[0].mxu0 %v2646
      %v2760 = vpop.f32.mrb[0].mxu0
      %v2761 = vadd.f32 0.0, %v2760
      %v2762 = vpop.f32.mrb[0].mxu0
      %2763 = vmatprep.mubr.f32.mxu0 0.0
      %2764 = vmatmul.mubr.f32.gmra.mrb[0].mxu0 %v2648
      %v2765 = vpop.f32.mrb[0].mxu0
      %v2766 = vadd.f32 0.0, %v2765
      %v2767 = vpop.f32.mrb[0].mxu0
      %2768 = vmatprep.mubr.f32.mxu0 0.0
      %2769 = vmatmul.mubr.f32.gmra.mrb[0].mxu0 %v2650
      %v2770 = vpop.f32.mrb[0].mxu0
      %v2771 = vadd.f32 0.0, %v2770
      %v2772 = vpop.f32.mrb[0].mxu0
      %2773 = vmatprep.mubr.f32.mxu0 0.0
      %2774 = vmatmul.mubr.f32.gmra.mrb[0].mxu0 %v2652
      %v2775 = vpop.f32.mrb[0].mxu0
      %v2776 = vadd.f32 0.0, %v2775
      %v2777 = vpop.f32.mrb[0].mxu0
      %2778 = vmatprep.mubr.f32.mxu0 0.0
      %2779 = vmatmul.mubr.f32.gmra.mrb[0].mxu0 %v2654
      %v2780 = vpop.f32.mrb[0].mxu0
      %v2781 = vadd.f32 0.0, %v2780
      %v2782 = vpop.f32.mrb[0].mxu0
      %2783 = vmatprep.mubr.f32.mxu0 0.0
      %2784 = vmatmul.mubr.f32.gmra.mrb[0].mxu0 %v2656
      %v2785 = vpop.f32.mrb[0].mxu0
      %v2786 = vadd.f32 0.0, %v2785
      %v2787 = vpop.f32.mrb[0].mxu0
      %2788 = vmatprep.mubr.f32.mxu0 0.0
      %2789 = vmatmul.mubr.f32.gmra.mrb[0].mxu0 %v2658
      %v2790 = vpop.f32.mrb[0].mxu0
      %v2791 = vadd.f32 0.0, %v2790
      %v2792 = vpop.f32.mrb[0].mxu0
      %2793 = vmatprep.mubr.f32.mxu0 0.0
      %2794 = vmatmul.mubr.f32.gmra.mrb[0].mxu0 %v2660
      %v2795 = vpop.f32.mrb[0].mxu0
      %v2796 = vadd.f32 0.0, %v2795
      %v2797 = vpop.f32.mrb[0].mxu0
      %2798 = vmatprep.mubr.f32.mxu0 0.0
      %2799 = vmatmul.mubr.f32.gmra.mrb[0].mxu0 %v2662
      %v2800 = vpop.f32.mrb[0].mxu0
      %v2801 = vadd.f32 0.0, %v2800
      %v2802 = vpop.f32.mrb[0].mxu0
      %2803 = vmatprep.mubr.f32.mxu0 0.0
      %2804 = vmatmul.mubr.f32.gmra.mrb[0].mxu0 %v2664
      %v2805 = vpop.f32.mrb[0].mxu0
      %v2806 = vadd.f32 0.0, %v2805
      %v2807 = vpop.f32.mrb[0].mxu0
      %2808 = vmatprep.mubr.f32.mxu0 0.0
      %2809 = vmatmul.mubr.f32.gmra.mrb[0].mxu0 %v2666
      %v2810 = vpop.f32.mrb[0].mxu0
      %v2811 = vadd.f32 0.0, %v2810
      %v2812 = vpop.f32.mrb[0].mxu0
      %2813 = vmatprep.mubr.f32.mxu0 0.0
      %2814 = vmatmul.mubr.f32.gmra.mrb[0].mxu0 %v2668
      %v2815 = vpop.f32.mrb[0].mxu0
      %v2816 = vadd.f32 0.0, %v2815
      %v2817 = vpop.f32.mrb[0].mxu0
      %2818 = vdwg.mxu0
      %2819 = vst.msk [vmem:[%s352] sm:$0xff] %vm2637, %v2741
      %2820 = vst.msk [vmem:[%s352 + $0x8] sm:$0xff] %vm2637, %v2746
      %2821 = vst.msk [vmem:[%s352 + $0x10] sm:$0xff] %vm2637, %v2751
      %2822 = vst.msk [vmem:[%s352 + $0x18] sm:$0xff] %vm2637, %v2756
      %2823 = vst.msk [vmem:[%s352 + $0x20] sm:$0xff] %vm2637, %v2761
      %2824 = vst.msk [vmem:[%s352 + $0x28] sm:$0xff] %vm2637, %v2766
      %2825 = vst.msk [vmem:[%s352 + $0x30] sm:$0xff] %vm2637, %v2771
      %2826 = vst.msk [vmem:[%s352 + $0x38] sm:$0xff] %vm2637, %v2776
      %2827 = vst.msk [vmem:[%s352 + $0x40] sm:$0xff] %vm2637, %v2781
      %2828 = vst.msk [vmem:[%s352 + $0x48] sm:$0xff] %vm2637, %v2786
      %2829 = vst.msk [vmem:[%s352 + $0x50] sm:$0xff] %vm2637, %v2791
      %2830 = vst.msk [vmem:[%s352 + $0x58] sm:$0xff] %vm2637, %v2796
      %2831 = vst.msk [vmem:[%s352 + $0x60] sm:$0xff] %vm2637, %v2801
      %2832 = vst.msk [vmem:[%s352 + $0x68] sm:$0xff] %vm2637, %v2806
      %2833 = vst.msk [vmem:[%s352 + $0x70] sm:$0xff] %vm2637, %v2811
      %2834 = vst.msk [vmem:[%s352 + $0x78] sm:$0xff] %vm2637, %v2816
      %v2835 = vsel %vm2637, %v2741, 0.0
      %v2836 = vsel %vm2637, %v2746, 0.0
      %v2837 = vadd.f32 %v2835, %v2836
      %v2838 = vsel %vm2637, %v2751, 0.0
      %v2839 = vadd.f32 %v2837, %v2838
      %v2840 = vsel %vm2637, %v2756, 0.0
      %v2841 = vadd.f32 %v2839, %v2840
      %v2842 = vsel %vm2637, %v2761, 0.0
      %v2843 = vadd.f32 %v2841, %v2842
      %v2844 = vsel %vm2637, %v2766, 0.0
      %v2845 = vadd.f32 %v2843, %v2844
      %v2846 = vsel %vm2637, %v2771, 0.0
      %v2847 = vadd.f32 %v2845, %v2846
      %v2848 = vsel %vm2637, %v2776, 0.0
      %v2849 = vadd.f32 %v2847, %v2848
      %v2850 = vsel %vm2637, %v2781, 0.0
      %v2851 = vadd.f32 %v2849, %v2850
      %v2852 = vsel %vm2637, %v2786, 0.0
      %v2853 = vadd.f32 %v2851, %v2852
      %v2854 = vsel %vm2637, %v2791, 0.0
      %v2855 = vadd.f32 %v2853, %v2854
      %v2856 = vsel %vm2637, %v2796, 0.0
      %v2857 = vadd.f32 %v2855, %v2856
      %v2858 = vsel %vm2637, %v2801, 0.0
      %v2859 = vadd.f32 %v2857, %v2858
      %v2860 = vsel %vm2637, %v2806, 0.0
      %v2861 = vadd.f32 %v2859, %v2860
      %v2862 = vsel %vm2637, %v2811, 0.0
      %v2863 = vadd.f32 %v2861, %v2862
      %v2864 = vsel %vm2637, %v2816, 0.0
      %v2865 = vadd.f32 %v2863, %v2864
      %v2866 = vrot.slane %v2865, 4
      %v2867 = vadd.f32 %v2865, %v2866
      %v2868 = vrot.slane %v2867, 2
      %v2869 = vadd.f32 %v2867, %v2868
      %v2870 = vrot.slane %v2869, 1
      %v2871 = vadd.f32 %v2869, %v2870
      %vm2872 = vcmask 24576
      %2873 = vst.msk [vmem:[%s358] sm:$0x1] %vm2872, %v2871
      %v2874 = vmul.f32 %v2741, %v2741
      %v2875 = vmul.f32 %v2746, %v2746
      %v2876 = vmul.f32 %v2751, %v2751
      %v2877 = vmul.f32 %v2756, %v2756
      %v2878 = vmul.f32 %v2761, %v2761
      %v2879 = vmul.f32 %v2766, %v2766
      %v2880 = vmul.f32 %v2771, %v2771
      %v2881 = vmul.f32 %v2776, %v2776
      %v2882 = vmul.f32 %v2781, %v2781
      %v2883 = vmul.f32 %v2786, %v2786
      %v2884 = vmul.f32 %v2791, %v2791
      %v2885 = vmul.f32 %v2796, %v2796
      %v2886 = vmul.f32 %v2801, %v2801
      %v2887 = vmul.f32 %v2806, %v2806
      %v2888 = vmul.f32 %v2811, %v2811
      %v2889 = vmul.f32 %v2816, %v2816
      %v2890 = vsel %vm2637, %v2874, 0.0
      %v2891 = vsel %vm2637, %v2875, 0.0
      %v2892 = vadd.f32 %v2890, %v2891
      %v2893 = vsel %vm2637, %v2876, 0.0
      %v2894 = vadd.f32 %v2892, %v2893
      %v2895 = vsel %vm2637, %v2877, 0.0
      %v2896 = vadd.f32 %v2894, %v2895
      %v2897 = vsel %vm2637, %v2878, 0.0
      %v2898 = vadd.f32 %v2896, %v2897
      %v2899 = vsel %vm2637, %v2879, 0.0
      %v2900 = vadd.f32 %v2898, %v2899
      %v2901 = vsel %vm2637, %v2880, 0.0
      %v2902 = vadd.f32 %v2900, %v2901
      %v2903 = vsel %vm2637, %v2881, 0.0
      %v2904 = vadd.f32 %v2902, %v2903
      %v2905 = vsel %vm2637, %v2882, 0.0
      %v2906 = vadd.f32 %v2904, %v2905
      %v2907 = vsel %vm2637, %v2883, 0.0
      %v2908 = vadd.f32 %v2906, %v2907
      %v2909 = vsel %vm2637, %v2884, 0.0
      %v2910 = vadd.f32 %v2908, %v2909
      %v2911 = vsel %vm2637, %v2885, 0.0
      %v2912 = vadd.f32 %v2910, %v2911
      %v2913 = vsel %vm2637, %v2886, 0.0
      %v2914 = vadd.f32 %v2912, %v2913
      %v2915 = vsel %vm2637, %v2887, 0.0
      %v2916 = vadd.f32 %v2914, %v2915
      %v2917 = vsel %vm2637, %v2888, 0.0
      %v2918 = vadd.f32 %v2916, %v2917
      %v2919 = vsel %vm2637, %v2889, 0.0
      %v2920 = vadd.f32 %v2918, %v2919
      %v2921 = vrot.slane %v2920, 4
      %v2922 = vadd.f32 %v2920, %v2921
      %v2923 = vrot.slane %v2922, 2
      %v2924 = vadd.f32 %v2922, %v2923
      %v2925 = vrot.slane %v2924, 1
      %v2926 = vadd.f32 %v2924, %v2925
      %2927 = vst.msk [vmem:[%s365] sm:$0x1] %vm2872, %v2926
      %s2928 = smul.u32 8, %s23
      %p2929 = scmp.lt.s32.totalorder %s22, 1
      %s2930 = scalar_select %p2929, %s22, 1
      %p2931 = scmp.lt.s32.totalorder %s2928, 15
      %s2932 = scalar_select %p2931, %s2928, 15
      %s2933 = smul.addr %s2932, 2
      %s2934 = smul.addr %s2930, 32
      %s2935 = sadd.s32 %s2933, %s2934
      %s2936 = smul.addr %s2935, 8
      %s2937 = scalar_lea.vmem %s4, %s2936
      %s2938 = smul.u32 %s22, 2
      %s2939 = sadd.s32 %s2938, %s23
      %p2940 = scmp.lt.s32.totalorder %s2939, 3
      %s2941 = scalar_select %p2940, %s2939, 3
      %s2942 = scalar_lea.vmem %s5, %s2941
      %s2943 = smul.u32 %s22, 2
      %s2944 = sadd.s32 %s2943, %s23
      %p2945 = scmp.lt.s32.totalorder %s2944, 3
      %s2946 = scalar_select %p2945, %s2944, 3
      %s2947 = scalar_lea.vmem %s6, %s2946
      // Predicated region
      $region37: #{akfb_forward.2} parent=35 // pred_check
        %p2948 = pneg %p153
      $region38: #{akfb_forward.2} parent=35 // pred_check_branch
        %2950 = sbr.rel (%p2948) target = $region40
      $region39: #{akfb_forward.2} parent=35 // pred_region
        %s2951 = smul.u32 8, %s23
      $region40: #{akfb_forward.2} parent=35 // pred_fallthru
        _
      // Predicated region
      $region41: #{akfb_forward.2} parent=35 // pred_check
        %p2952 = pneg %p183
      $region42: #{akfb_forward.2} parent=35 // pred_check_branch
        %2954 = sbr.rel (%p2952) target = $region44
      $region43: #{akfb_forward.2} parent=35 // pred_region
        %s2955 = smul.u32 %s22, 2
        %s2956 = sadd.s32 %s2955, %s23
      $region44: #{akfb_forward.2} parent=35 // pred_fallthru
        _
      // Predicated region
      $region45: #{akfb_forward.2} parent=35 // pred_check
        %p2957 = pneg %p213
      $region46: #{akfb_forward.2} parent=35 // pred_check_branch
        %2959 = sbr.rel (%p2957) target = $region48
      $region47: #{akfb_forward.2} parent=35 // pred_region
        %s2960 = smul.u32 %s22, 2
        %s2961 = sadd.s32 %s2960, %s23
      $region48: #{akfb_forward.2} parent=35 // pred_fallthru
        _
    $region36: #{akfb_forward.2} parent=5 // pred_fallthru
      _
    %p2962 = scmp.le.s32.totalorder 2, %s13
    // Predicated region
    $region49: #{akfb_forward.2} parent=5 // pred_check
      %p2963 = pneg %p2962
    $region50: #{akfb_forward.2} parent=5 // pred_check_branch
      %2965 = sbr.rel (%p2963) target = $region52
    $region51: #{akfb_forward.2} parent=5 // pred_region
      %s2966 = ssub.s32 %s13, 2
      // Predicated region
      $region53: #{akfb_forward.2} parent=51 // pred_check
        %p2967 = pneg %p159
      $region54: #{akfb_forward.2} parent=51 // pred_check_branch
        %2969 = sbr.rel (%p2967) target = $region56
      $region55: #{akfb_forward.2} parent=51 // pred_region
        %s2970 = smul.u32 8, %s25
        %p2971 = scmp.lt.s32.totalorder %s24, 1
        %s2972 = scalar_select %p2971, %s24, 1
        %p2973 = scmp.lt.s32.totalorder %s2970, 15
        %s2974 = scalar_select %p2973, %s2970, 15
        %s2975 = smul.addr %s2974, 2
        %s2976 = smul.addr %s2972, 32
        %s2977 = sadd.s32 %s2975, %s2976
        %s2978 = smul.addr %s2977, 8
        %s2979 = scalar_lea.vmem %s4, %s2978
      $region56: #{akfb_forward.2} parent=51 // pred_fallthru
        _
      // Predicated region
      $region57: #{akfb_forward.2} parent=51 // pred_check
        %p2980 = pneg %p189
      $region58: #{akfb_forward.2} parent=51 // pred_check_branch
        %2982 = sbr.rel (%p2980) target = $region60
      $region59: #{akfb_forward.2} parent=51 // pred_region
        %s2983 = smul.u32 %s24, 2
        %s2984 = sadd.s32 %s2983, %s25
        %p2985 = scmp.lt.s32.totalorder %s2984, 3
        %s2986 = scalar_select %p2985, %s2984, 3
        %s2987 = scalar_lea.vmem %s5, %s2986
      $region60: #{akfb_forward.2} parent=51 // pred_fallthru
        _
      // Predicated region
      $region61: #{akfb_forward.2} parent=51 // pred_check
        %p2988 = pneg %p219
      $region62: #{akfb_forward.2} parent=51 // pred_check_branch
        %2990 = sbr.rel (%p2988) target = $region64
      $region63: #{akfb_forward.2} parent=51 // pred_region
        %s2991 = smul.u32 %s24, 2
        %s2992 = sadd.s32 %s2991, %s25
        %p2993 = scmp.lt.s32.totalorder %s2992, 3
        %s2994 = scalar_select %p2993, %s2992, 3
        %s2995 = scalar_lea.vmem %s6, %s2994
      $region64: #{akfb_forward.2} parent=51 // pred_fallthru
        _
    $region52: #{akfb_forward.2} parent=5 // pred_fallthru
      _
  $region6: #{akfb_forward.2} parent=0 // loop_footer
    %s17 = sadd.s32 1, %s13
  $region7: #{akfb_forward.2} parent=0 // loop_footer_branch
    %12 = sbr.rel target = $region3
  $region8: #{akfb_forward.2} parent=0 // loop_exit
    _

</llo_original>
